<compile_context>
chip_gen: v7x
topology: tpu7x:2x2x1
jax: 0.10.0
libtpu: 0.0.40
codegen_flags: <defaults>
</compile_context>

<pallas_src>
import functools

import jax
import jax.numpy as jnp
import numpy as np
from jax.experimental import pallas as pl
from jax.experimental.pallas import tpu as pltpu

BN_EPS = 1e-5      # nn.BatchNorm1d default eps
L2_EPS = 1e-12     # F.normalize default eps

# --- scaled-down SimSiam dims (module uses dim=2048, dim_pred=512) ---
BATCH = 8
C, H, W = 3, 16, 16
DIM_IN = 256       # encoder feature dim (encoder.head.weight.shape[1])
DIM = 256          # projection dim   (2048 in the module)
DIM_PRED = 128     # predictor hidden (512 in the module)

_N_VEC_ROWS = 16   # 13 packed (1, N) vectors + 3 zero rows of sublane padding


# ----------------------------- fused kernel -----------------------------

def _bn_act_per_view(y, g, beta, b, relu):
    """Training-mode BatchNorm1d (batch stats, biased var) computed per view.

    Rows [:b] are view 1, rows [b:] are view 2. With b == 8 both slices are
    (8, 128)-sublane-tile aligned, so the slicing / concat is layout-free.
    One-pass statistics: var = E[y^2] - mean^2 (f32).
    """
    inv_b = 1.0 / b

    def one(yv):
        m = jnp.sum(yv, axis=0, keepdims=True) * inv_b
        v = jnp.sum(yv * yv, axis=0, keepdims=True) * inv_b - m * m
        yn = (yv - m) * jax.lax.rsqrt(v + BN_EPS)
        yn = yn * g + beta
        if relu:
            yn = jnp.maximum(yn, 0.0)
        return yn

    return jnp.concatenate([one(y[:b, :]), one(y[b:, :])], axis=0)


def _simsiam_fused_kernel(
    x1_ref, x2_ref,                 # [B, C*H*W] uint8, the two views
    w0_ref,                         # [C*H*W, DIM]  (backbone + head-0, folded)
    w1_ref, w2_ref,                 # [DIM, DIM]    head layers 1, 2
    pw0_ref, pw1_ref,               # [DIM, DIM_PRED], [DIM_PRED, DIM] predictor
    vec_ref,                        # [16, DIM] packed bias/gamma/beta vectors
    o_ref,                          # [1, 1] loss
    *, b):

    def vec(i, width=DIM):          # static-row slice of the packed vectors
        return vec_ref[i:i + 1, :width]

    # uint8 -> f32 (exact via i32 widening); the /255 of uint8_normalize is
    # already folded into w0, so no elementwise scale here.
    x1 = x1_ref[...].astype(jnp.int32).astype(jnp.float32)
    x2 = x2_ref[...].astype(jnp.int32).astype(jnp.float32)
    x = jnp.concatenate([x1, x2], axis=0)                     # [2B, C*H*W]

    # (backbone Linear ∘ head-0 Linear) folded into one matmul, then BN+ReLU.
    y = jnp.dot(x, w0_ref[...], preferred_element_type=jnp.float32) + vec(0)
    h = _bn_act_per_view(y, vec(1), vec(2), b, relu=True)
    # head layer 1: Linear + BN + ReLU
    y = jnp.dot(h, w1_ref[...], preferred_element_type=jnp.float32) + vec(3)
    h = _bn_act_per_view(y, vec(4), vec(5), b, relu=True)
    # head layer 2: Linear + BN
    y = jnp.dot(h, w2_ref[...], preferred_element_type=jnp.float32) + vec(6)
    z = _bn_act_per_view(y, vec(7), vec(8), b, relu=False)    # [2B, DIM]
    # predictor layer 0: Linear + BN + ReLU
    y = (jnp.dot(z, pw0_ref[...], preferred_element_type=jnp.float32)
         + vec(9, DIM_PRED))
    hp = _bn_act_per_view(y, vec(10, DIM_PRED), vec(11, DIM_PRED), b, relu=True)
    # predictor layer 1: Linear
    p = jnp.dot(hp, pw1_ref[...], preferred_element_type=jnp.float32) + vec(12)

    # loss = -(cos(p1, z2) + cos(p2, z1)) / 2 without materializing normalized
    # tensors: cos = <p, z> * rsqrt(max(||p||^2, eps^2)) * rsqrt(max(||z||^2, eps^2)).
    # z.detach() only affects gradients, not the forward value.
    inv_p = jax.lax.rsqrt(jnp.maximum(jnp.sum(p * p, axis=1, keepdims=True),
                                      L2_EPS * L2_EPS))       # (2B, 1)
    inv_z = jax.lax.rsqrt(jnp.maximum(jnp.sum(z * z, axis=1, keepdims=True),
                                      L2_EPS * L2_EPS))       # (2B, 1)
    cos12 = (jnp.sum(p[:b, :] * z[b:, :], axis=1, keepdims=True)
             * inv_p[:b, :] * inv_z[b:, :])                   # (b, 1)
    cos21 = (jnp.sum(p[b:, :] * z[:b, :], axis=1, keepdims=True)
             * inv_p[b:, :] * inv_z[:b, :])                   # (b, 1)
    o_ref[...] = -0.5 * (jnp.mean(cos12, axis=0, keepdims=True)
                         + jnp.mean(cos21, axis=0, keepdims=True))


# -------------------------- params / folding --------------------------

def _init_linear(key, fan_in, fan_out):
    k1, k2 = jax.random.split(key)
    bound = 1.0 / np.sqrt(fan_in)
    w = jax.random.uniform(k1, (fan_in, fan_out), jnp.float32, -bound, bound)
    b = jax.random.uniform(k2, (1, fan_out), jnp.float32, -bound, bound)
    return w, b


def init_params(key):
    ks = jax.random.split(key, 4)
    params = {}
    params["backbone"] = _init_linear(ks[0], C * H * W, DIM_IN)

    # head = Linear+BN+ReLU, Linear+BN+ReLU, Linear+BN
    head_dims = [(DIM_IN, DIM), (DIM, DIM), (DIM, DIM)]
    params["head"] = []
    for k, (a, o) in zip(jax.random.split(ks[1], 3), head_dims):
        w, b = _init_linear(k, a, o)
        params["head"].append(
            (w, b, jnp.ones((1, o), jnp.float32), jnp.zeros((1, o), jnp.float32)))

    # predictor = Linear+BN+ReLU, Linear
    w0, b0 = _init_linear(ks[2], DIM, DIM_PRED)
    w1, b1 = _init_linear(ks[3], DIM_PRED, DIM)
    params["pred"] = [
        (w0, b0, jnp.ones((1, DIM_PRED), jnp.float32),
         jnp.zeros((1, DIM_PRED), jnp.float32)),
        (w1, b1),
    ]
    return params


def fold_params(params):
    """One-time, init-side folding/packing for the kernel (not in the hot path).

    * backbone Linear + the /255 of uint8_normalize are folded into head
      layer 0 (no nonlinearity in between).
    * All (1, N) bias / gamma / beta vectors are packed into a single
      [16, DIM] f32 array (DIM_PRED-wide rows zero-padded on the lane axis).
    """
    wb, bb = params["backbone"]
    (hw0, hb0, hg0, hbe0), (hw1, hb1, hg1, hbe1), (hw2, hb2, hg2, hbe2) = params["head"]
    (pw0, pb0, pg0, pbe0), (pw1, pb1) = params["pred"]

    w0 = (wb * (1.0 / 255.0)) @ hw0          # [C*H*W, DIM]
    b0 = bb @ hw0 + hb0                      # [1, DIM]

    def pad(v):
        return jnp.pad(v, ((0, 0), (0, DIM - v.shape[1])))

    vecs = jnp.concatenate(
        [b0, hg0, hbe0,                      # rows 0..2  : folded head-0 BN
         hb1, hg1, hbe1,                     # rows 3..5  : head-1
         hb2, hg2, hbe2,                     # rows 6..8  : head-2
         pad(pb0), pad(pg0), pad(pbe0),      # rows 9..11 : predictor-0 (128-wide)
         pb1,                                # row 12     : predictor-1 bias
         jnp.zeros((_N_VEC_ROWS - 13, DIM), jnp.float32)], axis=0)

    return dict(w0=w0, w1=hw1, w2=hw2, pw0=pw0, pw1=pw1, vecs=vecs)


# ------------------------------ forward ------------------------------

@jax.jit
def simsiam_forward(kparams, x1_u8, x2_u8):
    b = x1_u8.shape[0]
    # No HBM-side concat of the two views: they enter the kernel as two refs.
    args = (x1_u8.reshape(b, -1), x2_u8.reshape(b, -1),
            kparams["w0"], kparams["w1"], kparams["w2"],
            kparams["pw0"], kparams["pw1"], kparams["vecs"])

    loss = pl.pallas_call(
        functools.partial(_simsiam_fused_kernel, b=b),
        out_shape=jax.ShapeDtypeStruct((1, 1), jnp.float32),
        in_specs=[pl.BlockSpec(memory_space=pltpu.MemorySpace.VMEM)
                  for _ in args],
        out_specs=pl.BlockSpec(memory_space=pltpu.MemorySpace.VMEM),
    )(*args)
    return loss[0, 0]


# -------------------------- pure-JAX reference --------------------------

def ref_forward(params, x1_u8, x2_u8):
    def bn(y):
        m = y.mean(0, keepdims=True)
        v = ((y - m) ** 2).mean(0, keepdims=True)
        return (y - m) / jnp.sqrt(v + BN_EPS)

    def enc(x_u8):
        x = x_u8.reshape(x_u8.shape[0], -1).astype(jnp.float32) / 255.0
        wb, bb = params["backbone"]
        h = x @ wb + bb
        n_head = len(params["head"])
        for i, (w, b, g, beta) in enumerate(params["head"]):
            y = bn(h @ w + b) * g + beta
            if i < n_head - 1:
                y = jnp.maximum(y, 0.0)
            h = y
        return h

    def pred(z):
        (w0, b0, g0, be0), (w1, b1) = params["pred"]
        h = jnp.maximum(bn(z @ w0 + b0) * g0 + be0, 0.0)
        return h @ w1 + b1

    def neg_cos(p, z):
        pn = p / jnp.maximum(jnp.linalg.norm(p, axis=1, keepdims=True), L2_EPS)
        zn = z / jnp.maximum(jnp.linalg.norm(z, axis=1, keepdims=True), L2_EPS)
        return -jnp.mean(jnp.sum(pn * zn, axis=1))

    z1, z2 = enc(x1_u8), enc(x2_u8)
    p1, p2 = pred(z1), pred(z2)
    return 0.5 * (neg_cos(p1, z2) + neg_cos(p2, z1))


if __name__ == "__main__":
    key = jax.random.PRNGKey(0)
    kx1, kx2, kp = jax.random.split(key, 3)
    x1 = jax.random.randint(kx1, (BATCH, C, H, W), 0, 256,
                            dtype=jnp.int32).astype(jnp.uint8)
    x2 = jax.random.randint(kx2, (BATCH, C, H, W), 0, 256,
                            dtype=jnp.int32).astype(jnp.uint8)
    params = init_params(kp)
    kparams = fold_params(params)   # init-time fold + pack (not in the hot path)

    loss = jax.block_until_ready(simsiam_forward(kparams, x1, x2))
    ref = float(ref_forward(params, x1, x2))

    assert np.isfinite(float(loss)), "loss is not finite"
    # Tolerance accounts for the (mathematically exact) backbone fold changing
    # f32 summation order vs. the unfused reference.
    np.testing.assert_allclose(float(loss), ref, rtol=5e-4, atol=5e-4)
    print("KERNEL_OK")
</pallas_src>

<mosaic_0001>
module attributes {stable_mosaic.version = 11 : i64} {
  func.func @_simsiam_fused_kernel(%arg0: memref<8x768xi8, #tpu.memory_space<vmem>>, %arg1: memref<8x768xi8, #tpu.memory_space<vmem>>, %arg2: memref<768x256xf32, #tpu.memory_space<vmem>>, %arg3: memref<256x256xf32, #tpu.memory_space<vmem>>, %arg4: memref<256x256xf32, #tpu.memory_space<vmem>>, %arg5: memref<256x128xf32, #tpu.memory_space<vmem>>, %arg6: memref<128x256xf32, #tpu.memory_space<vmem>>, %arg7: memref<16x256xf32, #tpu.memory_space<vmem>>, %arg8: memref<1x1xf32, #tpu.memory_space<vmem>>) attributes {dimension_semantics = [], scalar_prefetch = 0 : i64, scratch_operands = 0 : i64, tpu.core_type = #tpu.core_type<tc>} {
    %c0 = arith.constant 0 : index
    %c0_0 = arith.constant 0 : index
    %0 = vector.load %arg0[%c0, %c0_0] : memref<8x768xi8, #tpu.memory_space<vmem>>, vector<8x768xi8>
    %1 = arith.extui %0 : vector<8x768xi8> to vector<8x768xi32>
    %2 = arith.sitofp %1 : vector<8x768xi32> to vector<8x768xf32>
    %c0_1 = arith.constant 0 : index
    %c0_2 = arith.constant 0 : index
    %3 = vector.load %arg1[%c0_1, %c0_2] : memref<8x768xi8, #tpu.memory_space<vmem>>, vector<8x768xi8>
    %4 = arith.extui %3 : vector<8x768xi8> to vector<8x768xi32>
    %5 = arith.sitofp %4 : vector<8x768xi32> to vector<8x768xf32>
    %6 = tpu.concatenate %2, %5 in 0 : vector<8x768xf32>, vector<8x768xf32> -> vector<16x768xf32>
    %c0_3 = arith.constant 0 : index
    %c0_4 = arith.constant 0 : index
    %7 = vector.load %arg2[%c0_3, %c0_4] : memref<768x256xf32, #tpu.memory_space<vmem>>, vector<768x256xf32>
    %cst = arith.constant dense<0.000000e+00> : vector<16x256xf32>
    %8 = tpu.matmul %6, %7, %cst {dimension_numbers = #tpu.dot_dimension_numbers<[1], [0], [0], [1], [0, 0, 1, 1], [], []>} : vector<16x768xf32>, vector<768x256xf32>, vector<16x256xf32> -> vector<16x256xf32>
    %c0_5 = arith.constant 0 : index
    %c0_6 = arith.constant 0 : index
    %9 = vector.load %arg7[%c0_5, %c0_6] : memref<16x256xf32, #tpu.memory_space<vmem>>, vector<1x256xf32>
    %10 = vector.broadcast %9 : vector<1x256xf32> to vector<16x256xf32>
    %11 = arith.addf %8, %10 : vector<16x256xf32>
    %c1 = arith.constant 1 : index
    %c0_7 = arith.constant 0 : index
    %12 = vector.load %arg7[%c1, %c0_7] : memref<16x256xf32, #tpu.memory_space<vmem>>, vector<1x256xf32>
    %c2 = arith.constant 2 : index
    %c0_8 = arith.constant 0 : index
    %13 = vector.load %arg7[%c2, %c0_8] : memref<16x256xf32, #tpu.memory_space<vmem>>, vector<1x256xf32>
    %14 = vector.extract_strided_slice %11 {offsets = [0, 0], sizes = [8, 256], strides = [1, 1]} : vector<16x256xf32> to vector<8x256xf32>
    %cst_9 = arith.constant dense<0.000000e+00> : vector<256xf32>
    %15 = vector.multi_reduction <add>, %14, %cst_9 [0] : vector<8x256xf32> to vector<256xf32>
    %16 = vector.shape_cast %15 : vector<256xf32> to vector<1x256xf32>
    %cst_10 = arith.constant 1.250000e-01 : f32
    %17 = vector.broadcast %cst_10 : f32 to vector<1x256xf32>
    %18 = arith.mulf %16, %17 : vector<1x256xf32>
    %19 = arith.mulf %14, %14 : vector<8x256xf32>
    %cst_11 = arith.constant dense<0.000000e+00> : vector<256xf32>
    %20 = vector.multi_reduction <add>, %19, %cst_11 [0] : vector<8x256xf32> to vector<256xf32>
    %21 = vector.shape_cast %20 : vector<256xf32> to vector<1x256xf32>
    %cst_12 = arith.constant 1.250000e-01 : f32
    %22 = vector.broadcast %cst_12 : f32 to vector<1x256xf32>
    %23 = arith.mulf %21, %22 : vector<1x256xf32>
    %24 = arith.mulf %18, %18 : vector<1x256xf32>
    %25 = arith.subf %23, %24 : vector<1x256xf32>
    %26 = vector.broadcast %18 : vector<1x256xf32> to vector<8x256xf32>
    %27 = arith.subf %14, %26 : vector<8x256xf32>
    %cst_13 = arith.constant 9.99999974E-6 : f32
    %28 = vector.broadcast %cst_13 : f32 to vector<1x256xf32>
    %29 = arith.addf %25, %28 : vector<1x256xf32>
    %30 = math.rsqrt %29 : vector<1x256xf32>
    %31 = vector.broadcast %30 : vector<1x256xf32> to vector<8x256xf32>
    %32 = arith.mulf %27, %31 : vector<8x256xf32>
    %33 = vector.broadcast %12 : vector<1x256xf32> to vector<8x256xf32>
    %34 = arith.mulf %32, %33 : vector<8x256xf32>
    %35 = vector.broadcast %13 : vector<1x256xf32> to vector<8x256xf32>
    %36 = arith.addf %34, %35 : vector<8x256xf32>
    %cst_14 = arith.constant 0.000000e+00 : f32
    %37 = vector.broadcast %cst_14 : f32 to vector<8x256xf32>
    %38 = arith.maximumf %36, %37 : vector<8x256xf32>
    %39 = vector.extract_strided_slice %11 {offsets = [8, 0], sizes = [8, 256], strides = [1, 1]} : vector<16x256xf32> to vector<8x256xf32>
    %cst_15 = arith.constant dense<0.000000e+00> : vector<256xf32>
    %40 = vector.multi_reduction <add>, %39, %cst_15 [0] : vector<8x256xf32> to vector<256xf32>
    %41 = vector.shape_cast %40 : vector<256xf32> to vector<1x256xf32>
    %cst_16 = arith.constant 1.250000e-01 : f32
    %42 = vector.broadcast %cst_16 : f32 to vector<1x256xf32>
    %43 = arith.mulf %41, %42 : vector<1x256xf32>
    %44 = arith.mulf %39, %39 : vector<8x256xf32>
    %cst_17 = arith.constant dense<0.000000e+00> : vector<256xf32>
    %45 = vector.multi_reduction <add>, %44, %cst_17 [0] : vector<8x256xf32> to vector<256xf32>
    %46 = vector.shape_cast %45 : vector<256xf32> to vector<1x256xf32>
    %cst_18 = arith.constant 1.250000e-01 : f32
    %47 = vector.broadcast %cst_18 : f32 to vector<1x256xf32>
    %48 = arith.mulf %46, %47 : vector<1x256xf32>
    %49 = arith.mulf %43, %43 : vector<1x256xf32>
    %50 = arith.subf %48, %49 : vector<1x256xf32>
    %51 = vector.broadcast %43 : vector<1x256xf32> to vector<8x256xf32>
    %52 = arith.subf %39, %51 : vector<8x256xf32>
    %cst_19 = arith.constant 9.99999974E-6 : f32
    %53 = vector.broadcast %cst_19 : f32 to vector<1x256xf32>
    %54 = arith.addf %50, %53 : vector<1x256xf32>
    %55 = math.rsqrt %54 : vector<1x256xf32>
    %56 = vector.broadcast %55 : vector<1x256xf32> to vector<8x256xf32>
    %57 = arith.mulf %52, %56 : vector<8x256xf32>
    %58 = vector.broadcast %12 : vector<1x256xf32> to vector<8x256xf32>
    %59 = arith.mulf %57, %58 : vector<8x256xf32>
    %60 = vector.broadcast %13 : vector<1x256xf32> to vector<8x256xf32>
    %61 = arith.addf %59, %60 : vector<8x256xf32>
    %cst_20 = arith.constant 0.000000e+00 : f32
    %62 = vector.broadcast %cst_20 : f32 to vector<8x256xf32>
    %63 = arith.maximumf %61, %62 : vector<8x256xf32>
    %64 = tpu.concatenate %38, %63 in 0 : vector<8x256xf32>, vector<8x256xf32> -> vector<16x256xf32>
    %c0_21 = arith.constant 0 : index
    %c0_22 = arith.constant 0 : index
    %65 = vector.load %arg3[%c0_21, %c0_22] : memref<256x256xf32, #tpu.memory_space<vmem>>, vector<256x256xf32>
    %cst_23 = arith.constant dense<0.000000e+00> : vector<16x256xf32>
    %66 = tpu.matmul %64, %65, %cst_23 {dimension_numbers = #tpu.dot_dimension_numbers<[1], [0], [0], [1], [0, 0, 1, 1], [], []>} : vector<16x256xf32>, vector<256x256xf32>, vector<16x256xf32> -> vector<16x256xf32>
    %c3 = arith.constant 3 : index
    %c0_24 = arith.constant 0 : index
    %67 = vector.load %arg7[%c3, %c0_24] : memref<16x256xf32, #tpu.memory_space<vmem>>, vector<1x256xf32>
    %68 = vector.broadcast %67 : vector<1x256xf32> to vector<16x256xf32>
    %69 = arith.addf %66, %68 : vector<16x256xf32>
    %c4 = arith.constant 4 : index
    %c0_25 = arith.constant 0 : index
    %70 = vector.load %arg7[%c4, %c0_25] : memref<16x256xf32, #tpu.memory_space<vmem>>, vector<1x256xf32>
    %c5 = arith.constant 5 : index
    %c0_26 = arith.constant 0 : index
    %71 = vector.load %arg7[%c5, %c0_26] : memref<16x256xf32, #tpu.memory_space<vmem>>, vector<1x256xf32>
    %72 = vector.extract_strided_slice %69 {offsets = [0, 0], sizes = [8, 256], strides = [1, 1]} : vector<16x256xf32> to vector<8x256xf32>
    %cst_27 = arith.constant dense<0.000000e+00> : vector<256xf32>
    %73 = vector.multi_reduction <add>, %72, %cst_27 [0] : vector<8x256xf32> to vector<256xf32>
    %74 = vector.shape_cast %73 : vector<256xf32> to vector<1x256xf32>
    %cst_28 = arith.constant 1.250000e-01 : f32
    %75 = vector.broadcast %cst_28 : f32 to vector<1x256xf32>
    %76 = arith.mulf %74, %75 : vector<1x256xf32>
    %77 = arith.mulf %72, %72 : vector<8x256xf32>
    %cst_29 = arith.constant dense<0.000000e+00> : vector<256xf32>
    %78 = vector.multi_reduction <add>, %77, %cst_29 [0] : vector<8x256xf32> to vector<256xf32>
    %79 = vector.shape_cast %78 : vector<256xf32> to vector<1x256xf32>
    %cst_30 = arith.constant 1.250000e-01 : f32
    %80 = vector.broadcast %cst_30 : f32 to vector<1x256xf32>
    %81 = arith.mulf %79, %80 : vector<1x256xf32>
    %82 = arith.mulf %76, %76 : vector<1x256xf32>
    %83 = arith.subf %81, %82 : vector<1x256xf32>
    %84 = vector.broadcast %76 : vector<1x256xf32> to vector<8x256xf32>
    %85 = arith.subf %72, %84 : vector<8x256xf32>
    %cst_31 = arith.constant 9.99999974E-6 : f32
    %86 = vector.broadcast %cst_31 : f32 to vector<1x256xf32>
    %87 = arith.addf %83, %86 : vector<1x256xf32>
    %88 = math.rsqrt %87 : vector<1x256xf32>
    %89 = vector.broadcast %88 : vector<1x256xf32> to vector<8x256xf32>
    %90 = arith.mulf %85, %89 : vector<8x256xf32>
    %91 = vector.broadcast %70 : vector<1x256xf32> to vector<8x256xf32>
    %92 = arith.mulf %90, %91 : vector<8x256xf32>
    %93 = vector.broadcast %71 : vector<1x256xf32> to vector<8x256xf32>
    %94 = arith.addf %92, %93 : vector<8x256xf32>
    %cst_32 = arith.constant 0.000000e+00 : f32
    %95 = vector.broadcast %cst_32 : f32 to vector<8x256xf32>
    %96 = arith.maximumf %94, %95 : vector<8x256xf32>
    %97 = vector.extract_strided_slice %69 {offsets = [8, 0], sizes = [8, 256], strides = [1, 1]} : vector<16x256xf32> to vector<8x256xf32>
    %cst_33 = arith.constant dense<0.000000e+00> : vector<256xf32>
    %98 = vector.multi_reduction <add>, %97, %cst_33 [0] : vector<8x256xf32> to vector<256xf32>
    %99 = vector.shape_cast %98 : vector<256xf32> to vector<1x256xf32>
    %cst_34 = arith.constant 1.250000e-01 : f32
    %100 = vector.broadcast %cst_34 : f32 to vector<1x256xf32>
    %101 = arith.mulf %99, %100 : vector<1x256xf32>
    %102 = arith.mulf %97, %97 : vector<8x256xf32>
    %cst_35 = arith.constant dense<0.000000e+00> : vector<256xf32>
    %103 = vector.multi_reduction <add>, %102, %cst_35 [0] : vector<8x256xf32> to vector<256xf32>
    %104 = vector.shape_cast %103 : vector<256xf32> to vector<1x256xf32>
    %cst_36 = arith.constant 1.250000e-01 : f32
    %105 = vector.broadcast %cst_36 : f32 to vector<1x256xf32>
    %106 = arith.mulf %104, %105 : vector<1x256xf32>
    %107 = arith.mulf %101, %101 : vector<1x256xf32>
    %108 = arith.subf %106, %107 : vector<1x256xf32>
    %109 = vector.broadcast %101 : vector<1x256xf32> to vector<8x256xf32>
    %110 = arith.subf %97, %109 : vector<8x256xf32>
    %cst_37 = arith.constant 9.99999974E-6 : f32
    %111 = vector.broadcast %cst_37 : f32 to vector<1x256xf32>
    %112 = arith.addf %108, %111 : vector<1x256xf32>
    %113 = math.rsqrt %112 : vector<1x256xf32>
    %114 = vector.broadcast %113 : vector<1x256xf32> to vector<8x256xf32>
    %115 = arith.mulf %110, %114 : vector<8x256xf32>
    %116 = vector.broadcast %70 : vector<1x256xf32> to vector<8x256xf32>
    %117 = arith.mulf %115, %116 : vector<8x256xf32>
    %118 = vector.broadcast %71 : vector<1x256xf32> to vector<8x256xf32>
    %119 = arith.addf %117, %118 : vector<8x256xf32>
    %cst_38 = arith.constant 0.000000e+00 : f32
    %120 = vector.broadcast %cst_38 : f32 to vector<8x256xf32>
    %121 = arith.maximumf %119, %120 : vector<8x256xf32>
    %122 = tpu.concatenate %96, %121 in 0 : vector<8x256xf32>, vector<8x256xf32> -> vector<16x256xf32>
    %c0_39 = arith.constant 0 : index
    %c0_40 = arith.constant 0 : index
    %123 = vector.load %arg4[%c0_39, %c0_40] : memref<256x256xf32, #tpu.memory_space<vmem>>, vector<256x256xf32>
    %cst_41 = arith.constant dense<0.000000e+00> : vector<16x256xf32>
    %124 = tpu.matmul %122, %123, %cst_41 {dimension_numbers = #tpu.dot_dimension_numbers<[1], [0], [0], [1], [0, 0, 1, 1], [], []>} : vector<16x256xf32>, vector<256x256xf32>, vector<16x256xf32> -> vector<16x256xf32>
    %c6 = arith.constant 6 : index
    %c0_42 = arith.constant 0 : index
    %125 = vector.load %arg7[%c6, %c0_42] : memref<16x256xf32, #tpu.memory_space<vmem>>, vector<1x256xf32>
    %126 = vector.broadcast %125 : vector<1x256xf32> to vector<16x256xf32>
    %127 = arith.addf %124, %126 : vector<16x256xf32>
    %c7 = arith.constant 7 : index
    %c0_43 = arith.constant 0 : index
    %128 = vector.load %arg7[%c7, %c0_43] : memref<16x256xf32, #tpu.memory_space<vmem>>, vector<1x256xf32>
    %c8 = arith.constant 8 : index
    %c0_44 = arith.constant 0 : index
    %129 = vector.load %arg7[%c8, %c0_44] : memref<16x256xf32, #tpu.memory_space<vmem>>, vector<1x256xf32>
    %130 = vector.extract_strided_slice %127 {offsets = [0, 0], sizes = [8, 256], strides = [1, 1]} : vector<16x256xf32> to vector<8x256xf32>
    %cst_45 = arith.constant dense<0.000000e+00> : vector<256xf32>
    %131 = vector.multi_reduction <add>, %130, %cst_45 [0] : vector<8x256xf32> to vector<256xf32>
    %132 = vector.shape_cast %131 : vector<256xf32> to vector<1x256xf32>
    %cst_46 = arith.constant 1.250000e-01 : f32
    %133 = vector.broadcast %cst_46 : f32 to vector<1x256xf32>
    %134 = arith.mulf %132, %133 : vector<1x256xf32>
    %135 = arith.mulf %130, %130 : vector<8x256xf32>
    %cst_47 = arith.constant dense<0.000000e+00> : vector<256xf32>
    %136 = vector.multi_reduction <add>, %135, %cst_47 [0] : vector<8x256xf32> to vector<256xf32>
    %137 = vector.shape_cast %136 : vector<256xf32> to vector<1x256xf32>
    %cst_48 = arith.constant 1.250000e-01 : f32
    %138 = vector.broadcast %cst_48 : f32 to vector<1x256xf32>
    %139 = arith.mulf %137, %138 : vector<1x256xf32>
    %140 = arith.mulf %134, %134 : vector<1x256xf32>
    %141 = arith.subf %139, %140 : vector<1x256xf32>
    %142 = vector.broadcast %134 : vector<1x256xf32> to vector<8x256xf32>
    %143 = arith.subf %130, %142 : vector<8x256xf32>
    %cst_49 = arith.constant 9.99999974E-6 : f32
    %144 = vector.broadcast %cst_49 : f32 to vector<1x256xf32>
    %145 = arith.addf %141, %144 : vector<1x256xf32>
    %146 = math.rsqrt %145 : vector<1x256xf32>
    %147 = vector.broadcast %146 : vector<1x256xf32> to vector<8x256xf32>
    %148 = arith.mulf %143, %147 : vector<8x256xf32>
    %149 = vector.broadcast %128 : vector<1x256xf32> to vector<8x256xf32>
    %150 = arith.mulf %148, %149 : vector<8x256xf32>
    %151 = vector.broadcast %129 : vector<1x256xf32> to vector<8x256xf32>
    %152 = arith.addf %150, %151 : vector<8x256xf32>
    %153 = vector.extract_strided_slice %127 {offsets = [8, 0], sizes = [8, 256], strides = [1, 1]} : vector<16x256xf32> to vector<8x256xf32>
    %cst_50 = arith.constant dense<0.000000e+00> : vector<256xf32>
    %154 = vector.multi_reduction <add>, %153, %cst_50 [0] : vector<8x256xf32> to vector<256xf32>
    %155 = vector.shape_cast %154 : vector<256xf32> to vector<1x256xf32>
    %cst_51 = arith.constant 1.250000e-01 : f32
    %156 = vector.broadcast %cst_51 : f32 to vector<1x256xf32>
    %157 = arith.mulf %155, %156 : vector<1x256xf32>
    %158 = arith.mulf %153, %153 : vector<8x256xf32>
    %cst_52 = arith.constant dense<0.000000e+00> : vector<256xf32>
    %159 = vector.multi_reduction <add>, %158, %cst_52 [0] : vector<8x256xf32> to vector<256xf32>
    %160 = vector.shape_cast %159 : vector<256xf32> to vector<1x256xf32>
    %cst_53 = arith.constant 1.250000e-01 : f32
    %161 = vector.broadcast %cst_53 : f32 to vector<1x256xf32>
    %162 = arith.mulf %160, %161 : vector<1x256xf32>
    %163 = arith.mulf %157, %157 : vector<1x256xf32>
    %164 = arith.subf %162, %163 : vector<1x256xf32>
    %165 = vector.broadcast %157 : vector<1x256xf32> to vector<8x256xf32>
    %166 = arith.subf %153, %165 : vector<8x256xf32>
    %cst_54 = arith.constant 9.99999974E-6 : f32
    %167 = vector.broadcast %cst_54 : f32 to vector<1x256xf32>
    %168 = arith.addf %164, %167 : vector<1x256xf32>
    %169 = math.rsqrt %168 : vector<1x256xf32>
    %170 = vector.broadcast %169 : vector<1x256xf32> to vector<8x256xf32>
    %171 = arith.mulf %166, %170 : vector<8x256xf32>
    %172 = vector.broadcast %128 : vector<1x256xf32> to vector<8x256xf32>
    %173 = arith.mulf %171, %172 : vector<8x256xf32>
    %174 = vector.broadcast %129 : vector<1x256xf32> to vector<8x256xf32>
    %175 = arith.addf %173, %174 : vector<8x256xf32>
    %176 = tpu.concatenate %152, %175 in 0 : vector<8x256xf32>, vector<8x256xf32> -> vector<16x256xf32>
    %c0_55 = arith.constant 0 : index
    %c0_56 = arith.constant 0 : index
    %177 = vector.load %arg5[%c0_55, %c0_56] : memref<256x128xf32, #tpu.memory_space<vmem>>, vector<256x128xf32>
    %cst_57 = arith.constant dense<0.000000e+00> : vector<16x128xf32>
    %178 = tpu.matmul %176, %177, %cst_57 {dimension_numbers = #tpu.dot_dimension_numbers<[1], [0], [0], [1], [0, 0, 1, 1], [], []>} : vector<16x256xf32>, vector<256x128xf32>, vector<16x128xf32> -> vector<16x128xf32>
    %c9 = arith.constant 9 : index
    %c0_58 = arith.constant 0 : index
    %179 = vector.load %arg7[%c9, %c0_58] : memref<16x256xf32, #tpu.memory_space<vmem>>, vector<1x128xf32>
    %180 = vector.broadcast %179 : vector<1x128xf32> to vector<16x128xf32>
    %181 = arith.addf %178, %180 : vector<16x128xf32>
    %c10 = arith.constant 10 : index
    %c0_59 = arith.constant 0 : index
    %182 = vector.load %arg7[%c10, %c0_59] : memref<16x256xf32, #tpu.memory_space<vmem>>, vector<1x128xf32>
    %c11 = arith.constant 11 : index
    %c0_60 = arith.constant 0 : index
    %183 = vector.load %arg7[%c11, %c0_60] : memref<16x256xf32, #tpu.memory_space<vmem>>, vector<1x128xf32>
    %184 = vector.extract_strided_slice %181 {offsets = [0, 0], sizes = [8, 128], strides = [1, 1]} : vector<16x128xf32> to vector<8x128xf32>
    %cst_61 = arith.constant dense<0.000000e+00> : vector<128xf32>
    %185 = vector.multi_reduction <add>, %184, %cst_61 [0] : vector<8x128xf32> to vector<128xf32>
    %186 = vector.shape_cast %185 : vector<128xf32> to vector<1x128xf32>
    %cst_62 = arith.constant 1.250000e-01 : f32
    %187 = vector.broadcast %cst_62 : f32 to vector<1x128xf32>
    %188 = arith.mulf %186, %187 : vector<1x128xf32>
    %189 = arith.mulf %184, %184 : vector<8x128xf32>
    %cst_63 = arith.constant dense<0.000000e+00> : vector<128xf32>
    %190 = vector.multi_reduction <add>, %189, %cst_63 [0] : vector<8x128xf32> to vector<128xf32>
    %191 = vector.shape_cast %190 : vector<128xf32> to vector<1x128xf32>
    %cst_64 = arith.constant 1.250000e-01 : f32
    %192 = vector.broadcast %cst_64 : f32 to vector<1x128xf32>
    %193 = arith.mulf %191, %192 : vector<1x128xf32>
    %194 = arith.mulf %188, %188 : vector<1x128xf32>
    %195 = arith.subf %193, %194 : vector<1x128xf32>
    %196 = vector.broadcast %188 : vector<1x128xf32> to vector<8x128xf32>
    %197 = arith.subf %184, %196 : vector<8x128xf32>
    %cst_65 = arith.constant 9.99999974E-6 : f32
    %198 = vector.broadcast %cst_65 : f32 to vector<1x128xf32>
    %199 = arith.addf %195, %198 : vector<1x128xf32>
    %200 = math.rsqrt %199 : vector<1x128xf32>
    %201 = vector.broadcast %200 : vector<1x128xf32> to vector<8x128xf32>
    %202 = arith.mulf %197, %201 : vector<8x128xf32>
    %203 = vector.broadcast %182 : vector<1x128xf32> to vector<8x128xf32>
    %204 = arith.mulf %202, %203 : vector<8x128xf32>
    %205 = vector.broadcast %183 : vector<1x128xf32> to vector<8x128xf32>
    %206 = arith.addf %204, %205 : vector<8x128xf32>
    %cst_66 = arith.constant 0.000000e+00 : f32
    %207 = vector.broadcast %cst_66 : f32 to vector<8x128xf32>
    %208 = arith.maximumf %206, %207 : vector<8x128xf32>
    %209 = vector.extract_strided_slice %181 {offsets = [8, 0], sizes = [8, 128], strides = [1, 1]} : vector<16x128xf32> to vector<8x128xf32>
    %cst_67 = arith.constant dense<0.000000e+00> : vector<128xf32>
    %210 = vector.multi_reduction <add>, %209, %cst_67 [0] : vector<8x128xf32> to vector<128xf32>
    %211 = vector.shape_cast %210 : vector<128xf32> to vector<1x128xf32>
    %cst_68 = arith.constant 1.250000e-01 : f32
    %212 = vector.broadcast %cst_68 : f32 to vector<1x128xf32>
    %213 = arith.mulf %211, %212 : vector<1x128xf32>
    %214 = arith.mulf %209, %209 : vector<8x128xf32>
    %cst_69 = arith.constant dense<0.000000e+00> : vector<128xf32>
    %215 = vector.multi_reduction <add>, %214, %cst_69 [0] : vector<8x128xf32> to vector<128xf32>
    %216 = vector.shape_cast %215 : vector<128xf32> to vector<1x128xf32>
    %cst_70 = arith.constant 1.250000e-01 : f32
    %217 = vector.broadcast %cst_70 : f32 to vector<1x128xf32>
    %218 = arith.mulf %216, %217 : vector<1x128xf32>
    %219 = arith.mulf %213, %213 : vector<1x128xf32>
    %220 = arith.subf %218, %219 : vector<1x128xf32>
    %221 = vector.broadcast %213 : vector<1x128xf32> to vector<8x128xf32>
    %222 = arith.subf %209, %221 : vector<8x128xf32>
    %cst_71 = arith.constant 9.99999974E-6 : f32
    %223 = vector.broadcast %cst_71 : f32 to vector<1x128xf32>
    %224 = arith.addf %220, %223 : vector<1x128xf32>
    %225 = math.rsqrt %224 : vector<1x128xf32>
    %226 = vector.broadcast %225 : vector<1x128xf32> to vector<8x128xf32>
    %227 = arith.mulf %222, %226 : vector<8x128xf32>
    %228 = vector.broadcast %182 : vector<1x128xf32> to vector<8x128xf32>
    %229 = arith.mulf %227, %228 : vector<8x128xf32>
    %230 = vector.broadcast %183 : vector<1x128xf32> to vector<8x128xf32>
    %231 = arith.addf %229, %230 : vector<8x128xf32>
    %cst_72 = arith.constant 0.000000e+00 : f32
    %232 = vector.broadcast %cst_72 : f32 to vector<8x128xf32>
    %233 = arith.maximumf %231, %232 : vector<8x128xf32>
    %234 = tpu.concatenate %208, %233 in 0 : vector<8x128xf32>, vector<8x128xf32> -> vector<16x128xf32>
    %c0_73 = arith.constant 0 : index
    %c0_74 = arith.constant 0 : index
    %235 = vector.load %arg6[%c0_73, %c0_74] : memref<128x256xf32, #tpu.memory_space<vmem>>, vector<128x256xf32>
    %cst_75 = arith.constant dense<0.000000e+00> : vector<16x256xf32>
    %236 = tpu.matmul %234, %235, %cst_75 {dimension_numbers = #tpu.dot_dimension_numbers<[1], [0], [0], [1], [0, 0, 1, 1], [], []>} : vector<16x128xf32>, vector<128x256xf32>, vector<16x256xf32> -> vector<16x256xf32>
    %c12 = arith.constant 12 : index
    %c0_76 = arith.constant 0 : index
    %237 = vector.load %arg7[%c12, %c0_76] : memref<16x256xf32, #tpu.memory_space<vmem>>, vector<1x256xf32>
    %238 = vector.broadcast %237 : vector<1x256xf32> to vector<16x256xf32>
    %239 = arith.addf %236, %238 : vector<16x256xf32>
    %240 = arith.mulf %239, %239 : vector<16x256xf32>
    %cst_77 = arith.constant dense<0.000000e+00> : vector<16xf32>
    %241 = vector.multi_reduction <add>, %240, %cst_77 [1] : vector<16x256xf32> to vector<16xf32>
    %242 = vector.shape_cast %241 : vector<16xf32> to vector<16x1xf32>
    %cst_78 = arith.constant 1.000000e-24 : f32
    %243 = vector.broadcast %cst_78 : f32 to vector<16x1xf32>
    %244 = arith.maximumf %242, %243 : vector<16x1xf32>
    %245 = math.rsqrt %244 : vector<16x1xf32>
    %246 = arith.mulf %176, %176 : vector<16x256xf32>
    %cst_79 = arith.constant dense<0.000000e+00> : vector<16xf32>
    %247 = vector.multi_reduction <add>, %246, %cst_79 [1] : vector<16x256xf32> to vector<16xf32>
    %248 = vector.shape_cast %247 : vector<16xf32> to vector<16x1xf32>
    %cst_80 = arith.constant 1.000000e-24 : f32
    %249 = vector.broadcast %cst_80 : f32 to vector<16x1xf32>
    %250 = arith.maximumf %248, %249 : vector<16x1xf32>
    %251 = math.rsqrt %250 : vector<16x1xf32>
    %252 = vector.extract_strided_slice %239 {offsets = [0, 0], sizes = [8, 256], strides = [1, 1]} : vector<16x256xf32> to vector<8x256xf32>
    %253 = vector.extract_strided_slice %176 {offsets = [8, 0], sizes = [8, 256], strides = [1, 1]} : vector<16x256xf32> to vector<8x256xf32>
    %254 = arith.mulf %252, %253 : vector<8x256xf32>
    %cst_81 = arith.constant dense<0.000000e+00> : vector<8xf32>
    %255 = vector.multi_reduction <add>, %254, %cst_81 [1] : vector<8x256xf32> to vector<8xf32>
    %256 = vector.shape_cast %255 : vector<8xf32> to vector<8x1xf32>
    %257 = vector.extract_strided_slice %245 {offsets = [0, 0], sizes = [8, 1], strides = [1, 1]} : vector<16x1xf32> to vector<8x1xf32>
    %258 = arith.mulf %256, %257 : vector<8x1xf32>
    %259 = vector.extract_strided_slice %251 {offsets = [8, 0], sizes = [8, 1], strides = [1, 1]} : vector<16x1xf32> to vector<8x1xf32>
    %260 = arith.mulf %258, %259 : vector<8x1xf32>
    %261 = vector.extract_strided_slice %239 {offsets = [8, 0], sizes = [8, 256], strides = [1, 1]} : vector<16x256xf32> to vector<8x256xf32>
    %262 = vector.extract_strided_slice %176 {offsets = [0, 0], sizes = [8, 256], strides = [1, 1]} : vector<16x256xf32> to vector<8x256xf32>
    %263 = arith.mulf %261, %262 : vector<8x256xf32>
    %cst_82 = arith.constant dense<0.000000e+00> : vector<8xf32>
    %264 = vector.multi_reduction <add>, %263, %cst_82 [1] : vector<8x256xf32> to vector<8xf32>
    %265 = vector.shape_cast %264 : vector<8xf32> to vector<8x1xf32>
    %266 = vector.extract_strided_slice %245 {offsets = [8, 0], sizes = [8, 1], strides = [1, 1]} : vector<16x1xf32> to vector<8x1xf32>
    %267 = arith.mulf %265, %266 : vector<8x1xf32>
    %268 = vector.extract_strided_slice %251 {offsets = [0, 0], sizes = [8, 1], strides = [1, 1]} : vector<16x1xf32> to vector<8x1xf32>
    %269 = arith.mulf %267, %268 : vector<8x1xf32>
    %cst_83 = arith.constant dense<0.000000e+00> : vector<1xf32>
    %270 = vector.multi_reduction <add>, %260, %cst_83 [0] : vector<8x1xf32> to vector<1xf32>
    %271 = vector.shape_cast %270 : vector<1xf32> to vector<1x1xf32>
    %cst_84 = arith.constant 8.000000e+00 : f32
    %272 = vector.broadcast %cst_84 : f32 to vector<1x1xf32>
    %273 = arith.divf %271, %272 : vector<1x1xf32>
    %cst_85 = arith.constant dense<0.000000e+00> : vector<1xf32>
    %274 = vector.multi_reduction <add>, %269, %cst_85 [0] : vector<8x1xf32> to vector<1xf32>
    %275 = vector.shape_cast %274 : vector<1xf32> to vector<1x1xf32>
    %cst_86 = arith.constant 8.000000e+00 : f32
    %276 = vector.broadcast %cst_86 : f32 to vector<1x1xf32>
    %277 = arith.divf %275, %276 : vector<1x1xf32>
    %278 = arith.addf %273, %277 : vector<1x1xf32>
    %cst_87 = arith.constant -5.000000e-01 : f32
    %279 = vector.broadcast %cst_87 : f32 to vector<1x1xf32>
    %280 = arith.mulf %279, %278 : vector<1x1xf32>
    %c0_88 = arith.constant 0 : index
    %c0_89 = arith.constant 0 : index
    %281 = vector.load %arg8[%c0_88, %c0_89] : memref<1x1xf32, #tpu.memory_space<vmem>>, vector<1x1xf32>
    tpu.vector_store %arg8[%c0_88, %c0_89], %280 {strides = array<i32>} : memref<1x1xf32, #tpu.memory_space<vmem>>, vector<1x1xf32>,
    return
  }
}

</mosaic_0001>

<llo_original>
// kernel: simsiam_forward.1
$region0: #{simsiam_forward.1}
  #allocation0 [shape = 'u32[]', space=smem, size = 0x4, offset = 0x4, fixed_abs, tag = 'smem constant byte address 0x4 - core index']
  #allocation1 [shape = 'u32[144,128]{1,0:T(1,128)}', space=vmem, size = 0x12000, scoped, tag = 'internal scratch']
  %s0 = inlined_call_operand.vmem [shape: u8[8,768], index: 0, kind: input, shape index: {}]
  %s1 = inlined_call_operand.vmem [shape: u8[8,768], index: 1, kind: input, shape index: {}]
  %s2 = inlined_call_operand.hbm [shape: f32[768,256], index: 2, kind: input, shape index: {}]
  %s3 = inlined_call_operand.hbm [shape: f32[256,256], index: 3, kind: input, shape index: {}]
  %s4 = inlined_call_operand.hbm [shape: f32[256,256], index: 4, kind: input, shape index: {}]
  %s5 = inlined_call_operand.hbm [shape: f32[256,128], index: 5, kind: input, shape index: {}]
  %s6 = inlined_call_operand.hbm [shape: f32[128,256], index: 6, kind: input, shape index: {}]
  %s7 = inlined_call_operand.vmem [shape: f32[16,256], index: 7, kind: input, shape index: {}]
  %s8 = inlined_call_operand.hbm [shape: f32[1,1], index: 8, kind: output, shape index: {}]
  %s9 = sld [smem:[#allocation0]]
  $region62: #{simsiam_forward.1} parent=0
    _
  %s11 = ssub.s32 1, %s9
  %s12 = scalar_select 0, %s11, %s9
  $region1: #{simsiam_forward.1} parent=0
    #allocation2 [shape = 'u8[786432]{0}', space=vmem, size = 0xc0000, scoped, tag = 'input window, operand 2, single buffered']
    #allocation3 [shape = 's32[1]{0}', space=sflag, size = 0x4, scoped, tag = 'scoped memory for simsiam_forward.1']
    #allocation4 [shape = 's32[1]{0}', space=sflag, size = 0x4, scoped, tag = 'scoped memory for simsiam_forward.1']
    #allocation5 [shape = 'u8[262144]{0}', space=vmem, size = 0x40000, scoped, tag = 'input window, operand 3, single buffered']
    #allocation6 [shape = 's32[1]{0}', space=sflag, size = 0x4, scoped, tag = 'scoped memory for simsiam_forward.1']
    #allocation7 [shape = 'u8[262144]{0}', space=vmem, size = 0x40000, scoped, tag = 'input window, operand 4, single buffered']
    #allocation8 [shape = 'u8[131072]{0}', space=vmem, size = 0x20000, scoped, tag = 'input window, operand 5, single buffered']
    #allocation9 [shape = 's32[1]{0}', space=sflag, size = 0x4, scoped, tag = 'scoped memory for simsiam_forward.1']
    #allocation10 [shape = 'u8[131072]{0}', space=vmem, size = 0x20000, scoped, tag = 'input window, operand 6, single buffered']
    #allocation11 [shape = 'u8[512]{0}', space=vmem, size = 0x400, scoped, tag = 'output window, operand 0, single buffered']
    %13 = vsyncpa [#allocation3], 0
    %14 = vsyncpa [#allocation6], 0
    %15 = vsyncpa [#allocation9], 0
    %16 = vsyncpa [#allocation4], 0
    // Predicated region
    $region2: #{simsiam_forward.1} parent=1 // pred_check
      _
    $region3: #{simsiam_forward.1} parent=1 // pred_check_branch
      %18 = sbr.rel (0) target = $region5
    $region4: #{simsiam_forward.1} parent=1 // pred_region
      _
    $region5: #{simsiam_forward.1} parent=1 // pred_fallthru
      _
    // Predicated region
    $region6: #{simsiam_forward.1} parent=1 // pred_check
      _
    $region7: #{simsiam_forward.1} parent=1 // pred_check_branch
      %20 = sbr.rel (0) target = $region9
    $region8: #{simsiam_forward.1} parent=1 // pred_region
      _
    $region9: #{simsiam_forward.1} parent=1 // pred_fallthru
      _
    // Predicated region
    $region10: #{simsiam_forward.1} parent=1 // pred_check
      _
    $region11: #{simsiam_forward.1} parent=1 // pred_check_branch
      %22 = sbr.rel (0) target = $region13
    $region12: #{simsiam_forward.1} parent=1 // pred_region
      %s24 = ssub.s32 24576, 24576
      %25 = vsyncadd [#allocation3], %s24
      %s26 = sshll.u32 [#allocation2], 4
      %s27 = int_to_ptr.vmem [resolvable:$true] %s26
      %32 = dma.hbm_to_vmem [thread:$0]  %s2, 24576, %s27, [#allocation3], 256, 256, 16
    $region13: #{simsiam_forward.1} parent=1 // pred_fallthru
      _
    // Predicated region
    $region14: #{simsiam_forward.1} parent=1 // pred_check
      _
    $region15: #{simsiam_forward.1} parent=1 // pred_check_branch
      %34 = sbr.rel (0) target = $region17
    $region16: #{simsiam_forward.1} parent=1 // pred_region
      %s36 = ssub.s32 8192, 8192
      %37 = vsyncadd [#allocation6], %s36
      %s38 = sshll.u32 [#allocation5], 4
      %s39 = int_to_ptr.vmem [resolvable:$true] %s38
      %44 = dma.hbm_to_vmem [thread:$0]  %s3, 8192, %s39, [#allocation6], 256, 256, 16
    $region17: #{simsiam_forward.1} parent=1 // pred_fallthru
      _
    // Predicated region
    $region18: #{simsiam_forward.1} parent=1 // pred_check
      _
    $region19: #{simsiam_forward.1} parent=1 // pred_check_branch
      %46 = sbr.rel (0) target = $region21
    $region20: #{simsiam_forward.1} parent=1 // pred_region
      %s48 = ssub.s32 8192, 8192
      %49 = vsyncadd [#allocation6], %s48
      %s50 = sshll.u32 [#allocation7], 4
      %s51 = int_to_ptr.vmem [resolvable:$true] %s50
      %56 = dma.hbm_to_vmem [thread:$0]  %s4, 8192, %s51, [#allocation6], 256, 256, 16
    $region21: #{simsiam_forward.1} parent=1 // pred_fallthru
      _
    // Predicated region
    $region22: #{simsiam_forward.1} parent=1 // pred_check
      _
    $region23: #{simsiam_forward.1} parent=1 // pred_check_branch
      %58 = sbr.rel (0) target = $region25
    $region24: #{simsiam_forward.1} parent=1 // pred_region
      %s60 = ssub.s32 4096, 4096
      %61 = vsyncadd [#allocation9], %s60
      %s62 = sshll.u32 [#allocation8], 4
      %s63 = int_to_ptr.vmem [resolvable:$true] %s62
      %68 = dma.hbm_to_vmem [thread:$0]  %s5, 4096, %s63, [#allocation9], 128, 128, 8
    $region25: #{simsiam_forward.1} parent=1 // pred_fallthru
      _
    // Predicated region
    $region26: #{simsiam_forward.1} parent=1 // pred_check
      _
    $region27: #{simsiam_forward.1} parent=1 // pred_check_branch
      %70 = sbr.rel (0) target = $region29
    $region28: #{simsiam_forward.1} parent=1 // pred_region
      %s72 = ssub.s32 4096, 4096
      %73 = vsyncadd [#allocation9], %s72
      %s74 = sshll.u32 [#allocation10], 4
      %s75 = int_to_ptr.vmem [resolvable:$true] %s74
      %80 = dma.hbm_to_vmem [thread:$0]  %s6, 4096, %s75, [#allocation9], 256, 256, 16
    $region29: #{simsiam_forward.1} parent=1 // pred_fallthru
      _
    // Predicated region
    $region30: #{simsiam_forward.1} parent=1 // pred_check
      _
    $region31: #{simsiam_forward.1} parent=1 // pred_check_branch
      %82 = sbr.rel (0) target = $region33
    $region32: #{simsiam_forward.1} parent=1 // pred_region
      _
    $region33: #{simsiam_forward.1} parent=1 // pred_fallthru
      _
    // Predicated region
    $region34: #{simsiam_forward.1} parent=1 // pred_check
      _
    $region35: #{simsiam_forward.1} parent=1 // pred_check_branch
      %84 = sbr.rel (0) target = $region37
    $region36: #{simsiam_forward.1} parent=1 // pred_region
      %85 = dma.done [#allocation3], 24576
    $region37: #{simsiam_forward.1} parent=1 // pred_fallthru
      _
    // Predicated region
    $region38: #{simsiam_forward.1} parent=1 // pred_check
      _
    $region39: #{simsiam_forward.1} parent=1 // pred_check_branch
      %87 = sbr.rel (0) target = $region41
    $region40: #{simsiam_forward.1} parent=1 // pred_region
      %88 = dma.done [#allocation6], 8192
    $region41: #{simsiam_forward.1} parent=1 // pred_fallthru
      _
    // Predicated region
    $region42: #{simsiam_forward.1} parent=1 // pred_check
      _
    $region43: #{simsiam_forward.1} parent=1 // pred_check_branch
      %90 = sbr.rel (0) target = $region45
    $region44: #{simsiam_forward.1} parent=1 // pred_region
      %91 = dma.done [#allocation6], 8192
    $region45: #{simsiam_forward.1} parent=1 // pred_fallthru
      _
    // Predicated region
    $region46: #{simsiam_forward.1} parent=1 // pred_check
      _
    $region47: #{simsiam_forward.1} parent=1 // pred_check_branch
      %93 = sbr.rel (0) target = $region49
    $region48: #{simsiam_forward.1} parent=1 // pred_region
      %94 = dma.done [#allocation9], 4096
    $region49: #{simsiam_forward.1} parent=1 // pred_fallthru
      _
    // Predicated region
    $region50: #{simsiam_forward.1} parent=1 // pred_check
      _
    $region51: #{simsiam_forward.1} parent=1 // pred_check_branch
      %96 = sbr.rel (0) target = $region53
    $region52: #{simsiam_forward.1} parent=1 // pred_region
      %97 = dma.done [#allocation9], 4096
    $region53: #{simsiam_forward.1} parent=1 // pred_fallthru
      _
    %v98 = vld [vmem:[%s0] sm:$0xff]
    %v99 = vld [vmem:[%s0 + $0x8] sm:$0xf]
    %v100 = vunpack.c.0.s8 %v98
    %v101 = vunpack.c.1.s8 %v98
    %v102 = vunpack.c.2.s8 %v98
    %v103 = vunpack.c.3.s8 %v98
    %v104 = vunpack.c.0.s8 %v99
    %v105 = vunpack.c.1.s8 %v99
    %v106 = vand.u32 %v100, 255
    %v107 = vand.u32 %v101, 255
    %v108 = vand.u32 %v102, 255
    %v109 = vand.u32 %v103, 255
    %v110 = vand.u32 %v104, 255
    %v111 = vand.u32 %v105, 255
    %v112 = vcvt.s32.f32 %v106
    %v113 = vcvt.s32.f32 %v107
    %v114 = vcvt.s32.f32 %v108
    %v115 = vcvt.s32.f32 %v109
    %v116 = vcvt.s32.f32 %v110
    %v117 = vcvt.s32.f32 %v111
    %v118 = vld [vmem:[%s1] sm:$0xff]
    %v119 = vld [vmem:[%s1 + $0x8] sm:$0xf]
    %v120 = vunpack.c.0.s8 %v118
    %v121 = vunpack.c.1.s8 %v118
    %v122 = vunpack.c.2.s8 %v118
    %v123 = vunpack.c.3.s8 %v118
    %v124 = vunpack.c.0.s8 %v119
    %v125 = vunpack.c.1.s8 %v119
    %v126 = vand.u32 %v120, 255
    %v127 = vand.u32 %v121, 255
    %v128 = vand.u32 %v122, 255
    %v129 = vand.u32 %v123, 255
    %v130 = vand.u32 %v124, 255
    %v131 = vand.u32 %v125, 255
    %v132 = vcvt.s32.f32 %v126
    %v133 = vcvt.s32.f32 %v127
    %v134 = vcvt.s32.f32 %v128
    %v135 = vcvt.s32.f32 %v129
    %v136 = vcvt.s32.f32 %v130
    %v137 = vcvt.s32.f32 %v131
    %v138 = vld [vmem:[#allocation2] sm:$0xff]
    %v139 = vld [vmem:[#allocation2 + $0x8] sm:$0xff]
    %v140 = vld [vmem:[#allocation2 + $0x10] sm:$0xff]
    %v141 = vld [vmem:[#allocation2 + $0x18] sm:$0xff]
    %v142 = vld [vmem:[#allocation2 + $0x20] sm:$0xff]
    %v143 = vld [vmem:[#allocation2 + $0x28] sm:$0xff]
    %v144 = vld [vmem:[#allocation2 + $0x30] sm:$0xff]
    %v145 = vld [vmem:[#allocation2 + $0x38] sm:$0xff]
    %v146 = vld [vmem:[#allocation2 + $0x40] sm:$0xff]
    %v147 = vld [vmem:[#allocation2 + $0x48] sm:$0xff]
    %v148 = vld [vmem:[#allocation2 + $0x50] sm:$0xff]
    %v149 = vld [vmem:[#allocation2 + $0x58] sm:$0xff]
    %v150 = vld [vmem:[#allocation2 + $0x60] sm:$0xff]
    %v151 = vld [vmem:[#allocation2 + $0x68] sm:$0xff]
    %v152 = vld [vmem:[#allocation2 + $0x70] sm:$0xff]
    %v153 = vld [vmem:[#allocation2 + $0x78] sm:$0xff]
    %v154 = vld [vmem:[#allocation2 + $0x80] sm:$0xff]
    %v155 = vld [vmem:[#allocation2 + $0x88] sm:$0xff]
    %v156 = vld [vmem:[#allocation2 + $0x90] sm:$0xff]
    %v157 = vld [vmem:[#allocation2 + $0x98] sm:$0xff]
    %v158 = vld [vmem:[#allocation2 + $0xa0] sm:$0xff]
    %v159 = vld [vmem:[#allocation2 + $0xa8] sm:$0xff]
    %v160 = vld [vmem:[#allocation2 + $0xb0] sm:$0xff]
    %v161 = vld [vmem:[#allocation2 + $0xb8] sm:$0xff]
    %v162 = vld [vmem:[#allocation2 + $0xc0] sm:$0xff]
    %v163 = vld [vmem:[#allocation2 + $0xc8] sm:$0xff]
    %v164 = vld [vmem:[#allocation2 + $0xd0] sm:$0xff]
    %v165 = vld [vmem:[#allocation2 + $0xd8] sm:$0xff]
    %v166 = vld [vmem:[#allocation2 + $0xe0] sm:$0xff]
    %v167 = vld [vmem:[#allocation2 + $0xe8] sm:$0xff]
    %v168 = vld [vmem:[#allocation2 + $0xf0] sm:$0xff]
    %v169 = vld [vmem:[#allocation2 + $0xf8] sm:$0xff]
    %v170 = vld [vmem:[#allocation2 + $0x100] sm:$0xff]
    %v171 = vld [vmem:[#allocation2 + $0x108] sm:$0xff]
    %v172 = vld [vmem:[#allocation2 + $0x110] sm:$0xff]
    %v173 = vld [vmem:[#allocation2 + $0x118] sm:$0xff]
    %v174 = vld [vmem:[#allocation2 + $0x120] sm:$0xff]
    %v175 = vld [vmem:[#allocation2 + $0x128] sm:$0xff]
    %v176 = vld [vmem:[#allocation2 + $0x130] sm:$0xff]
    %v177 = vld [vmem:[#allocation2 + $0x138] sm:$0xff]
    %v178 = vld [vmem:[#allocation2 + $0x140] sm:$0xff]
    %v179 = vld [vmem:[#allocation2 + $0x148] sm:$0xff]
    %v180 = vld [vmem:[#allocation2 + $0x150] sm:$0xff]
    %v181 = vld [vmem:[#allocation2 + $0x158] sm:$0xff]
    %v182 = vld [vmem:[#allocation2 + $0x160] sm:$0xff]
    %v183 = vld [vmem:[#allocation2 + $0x168] sm:$0xff]
    %v184 = vld [vmem:[#allocation2 + $0x170] sm:$0xff]
    %v185 = vld [vmem:[#allocation2 + $0x178] sm:$0xff]
    %v186 = vld [vmem:[#allocation2 + $0x180] sm:$0xff]
    %v187 = vld [vmem:[#allocation2 + $0x188] sm:$0xff]
    %v188 = vld [vmem:[#allocation2 + $0x190] sm:$0xff]
    %v189 = vld [vmem:[#allocation2 + $0x198] sm:$0xff]
    %v190 = vld [vmem:[#allocation2 + $0x1a0] sm:$0xff]
    %v191 = vld [vmem:[#allocation2 + $0x1a8] sm:$0xff]
    %v192 = vld [vmem:[#allocation2 + $0x1b0] sm:$0xff]
    %v193 = vld [vmem:[#allocation2 + $0x1b8] sm:$0xff]
    %v194 = vld [vmem:[#allocation2 + $0x1c0] sm:$0xff]
    %v195 = vld [vmem:[#allocation2 + $0x1c8] sm:$0xff]
    %v196 = vld [vmem:[#allocation2 + $0x1d0] sm:$0xff]
    %v197 = vld [vmem:[#allocation2 + $0x1d8] sm:$0xff]
    %v198 = vld [vmem:[#allocation2 + $0x1e0] sm:$0xff]
    %v199 = vld [vmem:[#allocation2 + $0x1e8] sm:$0xff]
    %v200 = vld [vmem:[#allocation2 + $0x1f0] sm:$0xff]
    %v201 = vld [vmem:[#allocation2 + $0x1f8] sm:$0xff]
    %v202 = vld [vmem:[#allocation2 + $0x200] sm:$0xff]
    %v203 = vld [vmem:[#allocation2 + $0x208] sm:$0xff]
    %v204 = vld [vmem:[#allocation2 + $0x210] sm:$0xff]
    %v205 = vld [vmem:[#allocation2 + $0x218] sm:$0xff]
    %v206 = vld [vmem:[#allocation2 + $0x220] sm:$0xff]
    %v207 = vld [vmem:[#allocation2 + $0x228] sm:$0xff]
    %v208 = vld [vmem:[#allocation2 + $0x230] sm:$0xff]
    %v209 = vld [vmem:[#allocation2 + $0x238] sm:$0xff]
    %v210 = vld [vmem:[#allocation2 + $0x240] sm:$0xff]
    %v211 = vld [vmem:[#allocation2 + $0x248] sm:$0xff]
    %v212 = vld [vmem:[#allocation2 + $0x250] sm:$0xff]
    %v213 = vld [vmem:[#allocation2 + $0x258] sm:$0xff]
    %v214 = vld [vmem:[#allocation2 + $0x260] sm:$0xff]
    %v215 = vld [vmem:[#allocation2 + $0x268] sm:$0xff]
    %v216 = vld [vmem:[#allocation2 + $0x270] sm:$0xff]
    %v217 = vld [vmem:[#allocation2 + $0x278] sm:$0xff]
    %v218 = vld [vmem:[#allocation2 + $0x280] sm:$0xff]
    %v219 = vld [vmem:[#allocation2 + $0x288] sm:$0xff]
    %v220 = vld [vmem:[#allocation2 + $0x290] sm:$0xff]
    %v221 = vld [vmem:[#allocation2 + $0x298] sm:$0xff]
    %v222 = vld [vmem:[#allocation2 + $0x2a0] sm:$0xff]
    %v223 = vld [vmem:[#allocation2 + $0x2a8] sm:$0xff]
    %v224 = vld [vmem:[#allocation2 + $0x2b0] sm:$0xff]
    %v225 = vld [vmem:[#allocation2 + $0x2b8] sm:$0xff]
    %v226 = vld [vmem:[#allocation2 + $0x2c0] sm:$0xff]
    %v227 = vld [vmem:[#allocation2 + $0x2c8] sm:$0xff]
    %v228 = vld [vmem:[#allocation2 + $0x2d0] sm:$0xff]
    %v229 = vld [vmem:[#allocation2 + $0x2d8] sm:$0xff]
    %v230 = vld [vmem:[#allocation2 + $0x2e0] sm:$0xff]
    %v231 = vld [vmem:[#allocation2 + $0x2e8] sm:$0xff]
    %v232 = vld [vmem:[#allocation2 + $0x2f0] sm:$0xff]
    %v233 = vld [vmem:[#allocation2 + $0x2f8] sm:$0xff]
    %v234 = vld [vmem:[#allocation2 + $0x300] sm:$0xff]
    %v235 = vld [vmem:[#allocation2 + $0x308] sm:$0xff]
    %v236 = vld [vmem:[#allocation2 + $0x310] sm:$0xff]
    %v237 = vld [vmem:[#allocation2 + $0x318] sm:$0xff]
    %v238 = vld [vmem:[#allocation2 + $0x320] sm:$0xff]
    %v239 = vld [vmem:[#allocation2 + $0x328] sm:$0xff]
    %v240 = vld [vmem:[#allocation2 + $0x330] sm:$0xff]
    %v241 = vld [vmem:[#allocation2 + $0x338] sm:$0xff]
    %v242 = vld [vmem:[#allocation2 + $0x340] sm:$0xff]
    %v243 = vld [vmem:[#allocation2 + $0x348] sm:$0xff]
    %v244 = vld [vmem:[#allocation2 + $0x350] sm:$0xff]
    %v245 = vld [vmem:[#allocation2 + $0x358] sm:$0xff]
    %v246 = vld [vmem:[#allocation2 + $0x360] sm:$0xff]
    %v247 = vld [vmem:[#allocation2 + $0x368] sm:$0xff]
    %v248 = vld [vmem:[#allocation2 + $0x370] sm:$0xff]
    %v249 = vld [vmem:[#allocation2 + $0x378] sm:$0xff]
    %v250 = vld [vmem:[#allocation2 + $0x380] sm:$0xff]
    %v251 = vld [vmem:[#allocation2 + $0x388] sm:$0xff]
    %v252 = vld [vmem:[#allocation2 + $0x390] sm:$0xff]
    %v253 = vld [vmem:[#allocation2 + $0x398] sm:$0xff]
    %v254 = vld [vmem:[#allocation2 + $0x3a0] sm:$0xff]
    %v255 = vld [vmem:[#allocation2 + $0x3a8] sm:$0xff]
    %v256 = vld [vmem:[#allocation2 + $0x3b0] sm:$0xff]
    %v257 = vld [vmem:[#allocation2 + $0x3b8] sm:$0xff]
    %v258 = vld [vmem:[#allocation2 + $0x3c0] sm:$0xff]
    %v259 = vld [vmem:[#allocation2 + $0x3c8] sm:$0xff]
    %v260 = vld [vmem:[#allocation2 + $0x3d0] sm:$0xff]
    %v261 = vld [vmem:[#allocation2 + $0x3d8] sm:$0xff]
    %v262 = vld [vmem:[#allocation2 + $0x3e0] sm:$0xff]
    %v263 = vld [vmem:[#allocation2 + $0x3e8] sm:$0xff]
    %v264 = vld [vmem:[#allocation2 + $0x3f0] sm:$0xff]
    %v265 = vld [vmem:[#allocation2 + $0x3f8] sm:$0xff]
    %v266 = vld [vmem:[#allocation2 + $0x400] sm:$0xff]
    %v267 = vld [vmem:[#allocation2 + $0x408] sm:$0xff]
    %v268 = vld [vmem:[#allocation2 + $0x410] sm:$0xff]
    %v269 = vld [vmem:[#allocation2 + $0x418] sm:$0xff]
    %v270 = vld [vmem:[#allocation2 + $0x420] sm:$0xff]
    %v271 = vld [vmem:[#allocation2 + $0x428] sm:$0xff]
    %v272 = vld [vmem:[#allocation2 + $0x430] sm:$0xff]
    %v273 = vld [vmem:[#allocation2 + $0x438] sm:$0xff]
    %v274 = vld [vmem:[#allocation2 + $0x440] sm:$0xff]
    %v275 = vld [vmem:[#allocation2 + $0x448] sm:$0xff]
    %v276 = vld [vmem:[#allocation2 + $0x450] sm:$0xff]
    %v277 = vld [vmem:[#allocation2 + $0x458] sm:$0xff]
    %v278 = vld [vmem:[#allocation2 + $0x460] sm:$0xff]
    %v279 = vld [vmem:[#allocation2 + $0x468] sm:$0xff]
    %v280 = vld [vmem:[#allocation2 + $0x470] sm:$0xff]
    %v281 = vld [vmem:[#allocation2 + $0x478] sm:$0xff]
    %v282 = vld [vmem:[#allocation2 + $0x480] sm:$0xff]
    %v283 = vld [vmem:[#allocation2 + $0x488] sm:$0xff]
    %v284 = vld [vmem:[#allocation2 + $0x490] sm:$0xff]
    %v285 = vld [vmem:[#allocation2 + $0x498] sm:$0xff]
    %v286 = vld [vmem:[#allocation2 + $0x4a0] sm:$0xff]
    %v287 = vld [vmem:[#allocation2 + $0x4a8] sm:$0xff]
    %v288 = vld [vmem:[#allocation2 + $0x4b0] sm:$0xff]
    %v289 = vld [vmem:[#allocation2 + $0x4b8] sm:$0xff]
    %v290 = vld [vmem:[#allocation2 + $0x4c0] sm:$0xff]
    %v291 = vld [vmem:[#allocation2 + $0x4c8] sm:$0xff]
    %v292 = vld [vmem:[#allocation2 + $0x4d0] sm:$0xff]
    %v293 = vld [vmem:[#allocation2 + $0x4d8] sm:$0xff]
    %v294 = vld [vmem:[#allocation2 + $0x4e0] sm:$0xff]
    %v295 = vld [vmem:[#allocation2 + $0x4e8] sm:$0xff]
    %v296 = vld [vmem:[#allocation2 + $0x4f0] sm:$0xff]
    %v297 = vld [vmem:[#allocation2 + $0x4f8] sm:$0xff]
    %v298 = vld [vmem:[#allocation2 + $0x500] sm:$0xff]
    %v299 = vld [vmem:[#allocation2 + $0x508] sm:$0xff]
    %v300 = vld [vmem:[#allocation2 + $0x510] sm:$0xff]
    %v301 = vld [vmem:[#allocation2 + $0x518] sm:$0xff]
    %v302 = vld [vmem:[#allocation2 + $0x520] sm:$0xff]
    %v303 = vld [vmem:[#allocation2 + $0x528] sm:$0xff]
    %v304 = vld [vmem:[#allocation2 + $0x530] sm:$0xff]
    %v305 = vld [vmem:[#allocation2 + $0x538] sm:$0xff]
    %v306 = vld [vmem:[#allocation2 + $0x540] sm:$0xff]
    %v307 = vld [vmem:[#allocation2 + $0x548] sm:$0xff]
    %v308 = vld [vmem:[#allocation2 + $0x550] sm:$0xff]
    %v309 = vld [vmem:[#allocation2 + $0x558] sm:$0xff]
    %v310 = vld [vmem:[#allocation2 + $0x560] sm:$0xff]
    %v311 = vld [vmem:[#allocation2 + $0x568] sm:$0xff]
    %v312 = vld [vmem:[#allocation2 + $0x570] sm:$0xff]
    %v313 = vld [vmem:[#allocation2 + $0x578] sm:$0xff]
    %v314 = vld [vmem:[#allocation2 + $0x580] sm:$0xff]
    %v315 = vld [vmem:[#allocation2 + $0x588] sm:$0xff]
    %v316 = vld [vmem:[#allocation2 + $0x590] sm:$0xff]
    %v317 = vld [vmem:[#allocation2 + $0x598] sm:$0xff]
    %v318 = vld [vmem:[#allocation2 + $0x5a0] sm:$0xff]
    %v319 = vld [vmem:[#allocation2 + $0x5a8] sm:$0xff]
    %v320 = vld [vmem:[#allocation2 + $0x5b0] sm:$0xff]
    %v321 = vld [vmem:[#allocation2 + $0x5b8] sm:$0xff]
    %v322 = vld [vmem:[#allocation2 + $0x5c0] sm:$0xff]
    %v323 = vld [vmem:[#allocation2 + $0x5c8] sm:$0xff]
    %v324 = vld [vmem:[#allocation2 + $0x5d0] sm:$0xff]
    %v325 = vld [vmem:[#allocation2 + $0x5d8] sm:$0xff]
    %v326 = vld [vmem:[#allocation2 + $0x5e0] sm:$0xff]
    %v327 = vld [vmem:[#allocation2 + $0x5e8] sm:$0xff]
    %v328 = vld [vmem:[#allocation2 + $0x5f0] sm:$0xff]
    %v329 = vld [vmem:[#allocation2 + $0x5f8] sm:$0xff]
    %v330 = vld [vmem:[%s7] ss:$8 sm:$0x3]
    %v332 = vlaneseq
    %v333 = vshrl.u32 %v332, 7
    %v334 = vsub.s32 0, %v333
    %v335 = vrot.slane %v330, %v334
    %v336 = vlaneseq
    %v337 = vshrl.u32 %v336, 7
    %v338 = vsub.s32 1, %v337
    %v339 = vrot.slane %v330, %v338
    %342 = vmatprep.subr.mxu0 %v139
    %343 = vmatpush1.msra.mxu0 %v138
    %344 = vmatprep.subr.mxu0 %v141
    %345 = vmatpush1.msra.mxu0 %v140
    %346 = vmatprep.subr.mxu0 %v143
    %347 = vmatpush1.msra.mxu0 %v142
    %348 = vmatprep.subr.mxu0 %v145
    %349 = vmatpush1.msra.mxu0 %v144
    %350 = vmatprep.subr.mxu0 %v147
    %351 = vmatpush1.msra.mxu0 %v146
    %352 = vmatprep.subr.mxu0 %v149
    %353 = vmatpush1.msra.mxu0 %v148
    %354 = vmatprep.subr.mxu0 %v151
    %355 = vmatpush1.msra.mxu0 %v150
    %356 = vmatprep.subr.mxu0 %v153
    %357 = vmatpush1.msra.mxu0 %v152
    %358 = vmatprep.subr.mxu0 %v155
    %359 = vmatpush1.msra.mxu0 %v154
    %360 = vmatprep.subr.mxu0 %v157
    %361 = vmatpush1.msra.mxu0 %v156
    %362 = vmatprep.subr.mxu0 %v159
    %363 = vmatpush1.msra.mxu0 %v158
    %364 = vmatprep.subr.mxu0 %v161
    %365 = vmatpush1.msra.mxu0 %v160
    %366 = vmatprep.subr.mxu0 %v163
    %367 = vmatpush1.msra.mxu0 %v162
    %368 = vmatprep.subr.mxu0 %v165
    %369 = vmatpush1.msra.mxu0 %v164
    %370 = vmatprep.subr.mxu0 %v167
    %371 = vmatpush1.msra.mxu0 %v166
    %372 = vmatprep.subr.mxu0 %v169
    %373 = vmatpush1.msra.mxu0 %v168
    %374 = vmatprep.subr.mxu0 %v171
    %375 = vmatpush1.msra.mxu0 %v170
    %376 = vmatprep.subr.mxu0 %v173
    %377 = vmatpush1.msra.mxu0 %v172
    %378 = vmatprep.subr.mxu0 %v175
    %379 = vmatpush1.msra.mxu0 %v174
    %380 = vmatprep.subr.mxu0 %v177
    %381 = vmatpush1.msra.mxu0 %v176
    %382 = vmatprep.subr.mxu0 %v179
    %383 = vmatpush1.msra.mxu0 %v178
    %384 = vmatprep.subr.mxu0 %v181
    %385 = vmatpush1.msra.mxu0 %v180
    %386 = vmatprep.subr.mxu0 %v183
    %387 = vmatpush1.msra.mxu0 %v182
    %388 = vmatprep.subr.mxu0 %v185
    %389 = vmatpush1.msra.mxu0 %v184
    %390 = vmatprep.subr.mxu0 %v187
    %391 = vmatpush1.msra.mxu0 %v186
    %392 = vmatprep.subr.mxu0 %v189
    %393 = vmatpush1.msra.mxu0 %v188
    %394 = vmatprep.subr.mxu0 %v191
    %395 = vmatpush1.msra.mxu0 %v190
    %396 = vmatprep.subr.mxu0 %v193
    %397 = vmatpush1.msra.mxu0 %v192
    %398 = vmatprep.subr.mxu0 %v195
    %399 = vmatpush1.msra.mxu0 %v194
    %400 = vmatprep.subr.mxu0 %v197
    %401 = vmatpush1.msra.mxu0 %v196
    %402 = vmatprep.subr.mxu0 %v199
    %403 = vmatpush1.msra.mxu0 %v198
    %404 = vmatprep.subr.mxu0 %v201
    %405 = vmatpush1.msra.mxu0 %v200
    %406 = vmatprep.mubr.f32.mxu0 %v113
    %407 = vmatmul.mubr.f32.gmra.mrb[0].mxu0 %v112
    %v408 = vpop.f32.mrb[0].mxu0
    %v409 = vadd.f32 %v335, %v408
    %v410 = vpop.f32.mrb[0].mxu0
    %v411 = vadd.f32 %v339, %v410
    %412 = vmatprep.mubr.f32.mxu0 %v133
    %413 = vmatmul.mubr.f32.gmra.mrb[0].mxu0 %v132
    %v414 = vpop.f32.mrb[0].mxu0
    %v415 = vadd.f32 %v335, %v414
    %v416 = vpop.f32.mrb[0].mxu0
    %v417 = vadd.f32 %v339, %v416
    %418 = vdwg.mxu0
    %419 = vmatprep.subr.mxu0 %v203
    %420 = vmatpush1.msra.mxu0 %v202
    %421 = vmatprep.subr.mxu0 %v205
    %422 = vmatpush1.msra.mxu0 %v204
    %423 = vmatprep.subr.mxu0 %v207
    %424 = vmatpush1.msra.mxu0 %v206
    %425 = vmatprep.subr.mxu0 %v209
    %426 = vmatpush1.msra.mxu0 %v208
    %427 = vmatprep.subr.mxu0 %v211
    %428 = vmatpush1.msra.mxu0 %v210
    %429 = vmatprep.subr.mxu0 %v213
    %430 = vmatpush1.msra.mxu0 %v212
    %431 = vmatprep.subr.mxu0 %v215
    %432 = vmatpush1.msra.mxu0 %v214
    %433 = vmatprep.subr.mxu0 %v217
    %434 = vmatpush1.msra.mxu0 %v216
    %435 = vmatprep.subr.mxu0 %v219
    %436 = vmatpush1.msra.mxu0 %v218
    %437 = vmatprep.subr.mxu0 %v221
    %438 = vmatpush1.msra.mxu0 %v220
    %439 = vmatprep.subr.mxu0 %v223
    %440 = vmatpush1.msra.mxu0 %v222
    %441 = vmatprep.subr.mxu0 %v225
    %442 = vmatpush1.msra.mxu0 %v224
    %443 = vmatprep.subr.mxu0 %v227
    %444 = vmatpush1.msra.mxu0 %v226
    %445 = vmatprep.subr.mxu0 %v229
    %446 = vmatpush1.msra.mxu0 %v228
    %447 = vmatprep.subr.mxu0 %v231
    %448 = vmatpush1.msra.mxu0 %v230
    %449 = vmatprep.subr.mxu0 %v233
    %450 = vmatpush1.msra.mxu0 %v232
    %451 = vmatprep.subr.mxu0 %v235
    %452 = vmatpush1.msra.mxu0 %v234
    %453 = vmatprep.subr.mxu0 %v237
    %454 = vmatpush1.msra.mxu0 %v236
    %455 = vmatprep.subr.mxu0 %v239
    %456 = vmatpush1.msra.mxu0 %v238
    %457 = vmatprep.subr.mxu0 %v241
    %458 = vmatpush1.msra.mxu0 %v240
    %459 = vmatprep.subr.mxu0 %v243
    %460 = vmatpush1.msra.mxu0 %v242
    %461 = vmatprep.subr.mxu0 %v245
    %462 = vmatpush1.msra.mxu0 %v244
    %463 = vmatprep.subr.mxu0 %v247
    %464 = vmatpush1.msra.mxu0 %v246
    %465 = vmatprep.subr.mxu0 %v249
    %466 = vmatpush1.msra.mxu0 %v248
    %467 = vmatprep.subr.mxu0 %v251
    %468 = vmatpush1.msra.mxu0 %v250
    %469 = vmatprep.subr.mxu0 %v253
    %470 = vmatpush1.msra.mxu0 %v252
    %471 = vmatprep.subr.mxu0 %v255
    %472 = vmatpush1.msra.mxu0 %v254
    %473 = vmatprep.subr.mxu0 %v257
    %474 = vmatpush1.msra.mxu0 %v256
    %475 = vmatprep.subr.mxu0 %v259
    %476 = vmatpush1.msra.mxu0 %v258
    %477 = vmatprep.subr.mxu0 %v261
    %478 = vmatpush1.msra.mxu0 %v260
    %479 = vmatprep.subr.mxu0 %v263
    %480 = vmatpush1.msra.mxu0 %v262
    %481 = vmatprep.subr.mxu0 %v265
    %482 = vmatpush1.msra.mxu0 %v264
    %483 = vmatprep.mubr.f32.mxu0 %v115
    %484 = vmatmul.mubr.f32.gmra.mrb[0].mxu0 %v114
    %v485 = vpop.f32.mrb[0].mxu0
    %v486 = vadd.f32 %v409, %v485
    %v487 = vpop.f32.mrb[0].mxu0
    %v488 = vadd.f32 %v411, %v487
    %489 = vmatprep.mubr.f32.mxu0 %v135
    %490 = vmatmul.mubr.f32.gmra.mrb[0].mxu0 %v134
    %v491 = vpop.f32.mrb[0].mxu0
    %v492 = vadd.f32 %v415, %v491
    %v493 = vpop.f32.mrb[0].mxu0
    %v494 = vadd.f32 %v417, %v493
    %495 = vdwg.mxu0
    %496 = vmatprep.subr.mxu0 %v267
    %497 = vmatpush1.msra.mxu0 %v266
    %498 = vmatprep.subr.mxu0 %v269
    %499 = vmatpush1.msra.mxu0 %v268
    %500 = vmatprep.subr.mxu0 %v271
    %501 = vmatpush1.msra.mxu0 %v270
    %502 = vmatprep.subr.mxu0 %v273
    %503 = vmatpush1.msra.mxu0 %v272
    %504 = vmatprep.subr.mxu0 %v275
    %505 = vmatpush1.msra.mxu0 %v274
    %506 = vmatprep.subr.mxu0 %v277
    %507 = vmatpush1.msra.mxu0 %v276
    %508 = vmatprep.subr.mxu0 %v279
    %509 = vmatpush1.msra.mxu0 %v278
    %510 = vmatprep.subr.mxu0 %v281
    %511 = vmatpush1.msra.mxu0 %v280
    %512 = vmatprep.subr.mxu0 %v283
    %513 = vmatpush1.msra.mxu0 %v282
    %514 = vmatprep.subr.mxu0 %v285
    %515 = vmatpush1.msra.mxu0 %v284
    %516 = vmatprep.subr.mxu0 %v287
    %517 = vmatpush1.msra.mxu0 %v286
    %518 = vmatprep.subr.mxu0 %v289
    %519 = vmatpush1.msra.mxu0 %v288
    %520 = vmatprep.subr.mxu0 %v291
    %521 = vmatpush1.msra.mxu0 %v290
    %522 = vmatprep.subr.mxu0 %v293
    %523 = vmatpush1.msra.mxu0 %v292
    %524 = vmatprep.subr.mxu0 %v295
    %525 = vmatpush1.msra.mxu0 %v294
    %526 = vmatprep.subr.mxu0 %v297
    %527 = vmatpush1.msra.mxu0 %v296
    %528 = vmatprep.subr.mxu0 %v299
    %529 = vmatpush1.msra.mxu0 %v298
    %530 = vmatprep.subr.mxu0 %v301
    %531 = vmatpush1.msra.mxu0 %v300
    %532 = vmatprep.subr.mxu0 %v303
    %533 = vmatpush1.msra.mxu0 %v302
    %534 = vmatprep.subr.mxu0 %v305
    %535 = vmatpush1.msra.mxu0 %v304
    %536 = vmatprep.subr.mxu0 %v307
    %537 = vmatpush1.msra.mxu0 %v306
    %538 = vmatprep.subr.mxu0 %v309
    %539 = vmatpush1.msra.mxu0 %v308
    %540 = vmatprep.subr.mxu0 %v311
    %541 = vmatpush1.msra.mxu0 %v310
    %542 = vmatprep.subr.mxu0 %v313
    %543 = vmatpush1.msra.mxu0 %v312
    %544 = vmatprep.subr.mxu0 %v315
    %545 = vmatpush1.msra.mxu0 %v314
    %546 = vmatprep.subr.mxu0 %v317
    %547 = vmatpush1.msra.mxu0 %v316
    %548 = vmatprep.subr.mxu0 %v319
    %549 = vmatpush1.msra.mxu0 %v318
    %550 = vmatprep.subr.mxu0 %v321
    %551 = vmatpush1.msra.mxu0 %v320
    %552 = vmatprep.subr.mxu0 %v323
    %553 = vmatpush1.msra.mxu0 %v322
    %554 = vmatprep.subr.mxu0 %v325
    %555 = vmatpush1.msra.mxu0 %v324
    %556 = vmatprep.subr.mxu0 %v327
    %557 = vmatpush1.msra.mxu0 %v326
    %558 = vmatprep.subr.mxu0 %v329
    %559 = vmatpush1.msra.mxu0 %v328
    %560 = vmatprep.mubr.f32.mxu0 %v117
    %561 = vmatmul.mubr.f32.gmra.mrb[0].mxu0 %v116
    %v562 = vpop.f32.mrb[0].mxu0
    %v563 = vadd.f32 %v486, %v562
    %v564 = vpop.f32.mrb[0].mxu0
    %v565 = vadd.f32 %v488, %v564
    %566 = vmatprep.mubr.f32.mxu0 %v137
    %567 = vmatmul.mubr.f32.gmra.mrb[0].mxu0 %v136
    %v568 = vpop.f32.mrb[0].mxu0
    %v569 = vadd.f32 %v492, %v568
    %v570 = vpop.f32.mrb[0].mxu0
    %v571 = vadd.f32 %v494, %v570
    %572 = vdwg.mxu0
    %s573 = scalar_lea.vmem %s7, 1
    %v574 = vld [vmem:[%s573] ss:$8 sm:$0x3]
    %s575 = scalar_lea.vmem %s7, 2
    %v576 = vld [vmem:[%s575] ss:$8 sm:$0x3]
    %v577 = vrot.slane %v563, 4
    %v578 = vadd.f32 %v563, %v577
    %v579 = vrot.slane %v578, 2
    %v580 = vadd.f32 %v578, %v579
    %v581 = vrot.slane %v580, 1
    %v582 = vadd.f32 %v580, %v581
    %v583 = vrot.slane %v565, 4
    %v584 = vadd.f32 %v565, %v583
    %v585 = vrot.slane %v584, 2
    %v586 = vadd.f32 %v584, %v585
    %v587 = vrot.slane %v586, 1
    %v588 = vadd.f32 %v586, %v587
    %v589 = vmul.f32 %v582, 0.125
    %v590 = vmul.f32 %v588, 0.125
    %v591 = vmul.f32 %v563, %v563
    %v592 = vmul.f32 %v565, %v565
    %v593 = vrot.slane %v591, 4
    %v594 = vadd.f32 %v591, %v593
    %v595 = vrot.slane %v594, 2
    %v596 = vadd.f32 %v594, %v595
    %v597 = vrot.slane %v596, 1
    %v598 = vadd.f32 %v596, %v597
    %v599 = vrot.slane %v592, 4
    %v600 = vadd.f32 %v592, %v599
    %v601 = vrot.slane %v600, 2
    %v602 = vadd.f32 %v600, %v601
    %v603 = vrot.slane %v602, 1
    %v604 = vadd.f32 %v602, %v603
    %v605 = vmul.f32 %v598, 0.125
    %v606 = vmul.f32 %v604, 0.125
    %v607 = vmul.f32 %v589, %v589
    %v608 = vmul.f32 %v590, %v590
    %v609 = vsub.f32 %v605, %v607
    %v610 = vsub.f32 %v606, %v608
    %v611 = vsub.f32 %v563, %v589
    %v612 = vsub.f32 %v565, %v590
    %v613 = vadd.f32 %v609, 1e-05
    %v614 = vadd.f32 %v610, 1e-05
    %v615 = vrsqrt.pop %v613
    %v616 = vrsqrt.pop %v614
    %v617 = vmul.f32 %v611, %v615
    %v618 = vmul.f32 %v612, %v616
    %v620 = vlaneseq
    %v621 = vshrl.u32 %v620, 7
    %v622 = vsub.s32 0, %v621
    %v623 = vrot.slane %v574, %v622
    %v624 = vlaneseq
    %v625 = vshrl.u32 %v624, 7
    %v626 = vsub.s32 1, %v625
    %v627 = vrot.slane %v574, %v626
    %v630 = vmul.f32 %v617, %v623
    %v631 = vmul.f32 %v618, %v627
    %v633 = vlaneseq
    %v634 = vshrl.u32 %v633, 7
    %v635 = vsub.s32 0, %v634
    %v636 = vrot.slane %v576, %v635
    %v637 = vlaneseq
    %v638 = vshrl.u32 %v637, 7
    %v639 = vsub.s32 1, %v638
    %v640 = vrot.slane %v576, %v639
    %v643 = vadd.f32 %v630, %v636
    %v644 = vadd.f32 %v631, %v640
    %v645 = vmax.f32 %v643, 0.0
    %v646 = vmax.f32 %v644, 0.0
    %v647 = vrot.slane %v569, 4
    %v648 = vadd.f32 %v569, %v647
    %v649 = vrot.slane %v648, 2
    %v650 = vadd.f32 %v648, %v649
    %v651 = vrot.slane %v650, 1
    %v652 = vadd.f32 %v650, %v651
    %v653 = vrot.slane %v571, 4
    %v654 = vadd.f32 %v571, %v653
    %v655 = vrot.slane %v654, 2
    %v656 = vadd.f32 %v654, %v655
    %v657 = vrot.slane %v656, 1
    %v658 = vadd.f32 %v656, %v657
    %v659 = vmul.f32 %v652, 0.125
    %v660 = vmul.f32 %v658, 0.125
    %v661 = vmul.f32 %v569, %v569
    %v662 = vmul.f32 %v571, %v571
    %v663 = vrot.slane %v661, 4
    %v664 = vadd.f32 %v661, %v663
    %v665 = vrot.slane %v664, 2
    %v666 = vadd.f32 %v664, %v665
    %v667 = vrot.slane %v666, 1
    %v668 = vadd.f32 %v666, %v667
    %v669 = vrot.slane %v662, 4
    %v670 = vadd.f32 %v662, %v669
    %v671 = vrot.slane %v670, 2
    %v672 = vadd.f32 %v670, %v671
    %v673 = vrot.slane %v672, 1
    %v674 = vadd.f32 %v672, %v673
    %v675 = vmul.f32 %v668, 0.125
    %v676 = vmul.f32 %v674, 0.125
    %v677 = vmul.f32 %v659, %v659
    %v678 = vmul.f32 %v660, %v660
    %v679 = vsub.f32 %v675, %v677
    %v680 = vsub.f32 %v676, %v678
    %v681 = vsub.f32 %v569, %v659
    %v682 = vsub.f32 %v571, %v660
    %v683 = vadd.f32 %v679, 1e-05
    %v684 = vadd.f32 %v680, 1e-05
    %v685 = vrsqrt.pop %v683
    %v686 = vrsqrt.pop %v684
    %v687 = vmul.f32 %v681, %v685
    %v688 = vmul.f32 %v682, %v686
    %v689 = vmul.f32 %v687, %v623
    %v690 = vmul.f32 %v688, %v627
    %v691 = vadd.f32 %v689, %v636
    %v692 = vadd.f32 %v690, %v640
    %v693 = vmax.f32 %v691, 0.0
    %v694 = vmax.f32 %v692, 0.0
    %v695 = vld [vmem:[#allocation5] sm:$0xff]
    %v696 = vld [vmem:[#allocation5 + $0x8] sm:$0xff]
    %v697 = vld [vmem:[#allocation5 + $0x10] sm:$0xff]
    %v698 = vld [vmem:[#allocation5 + $0x18] sm:$0xff]
    %v699 = vld [vmem:[#allocation5 + $0x20] sm:$0xff]
    %v700 = vld [vmem:[#allocation5 + $0x28] sm:$0xff]
    %v701 = vld [vmem:[#allocation5 + $0x30] sm:$0xff]
    %v702 = vld [vmem:[#allocation5 + $0x38] sm:$0xff]
    %v703 = vld [vmem:[#allocation5 + $0x40] sm:$0xff]
    %v704 = vld [vmem:[#allocation5 + $0x48] sm:$0xff]
    %v705 = vld [vmem:[#allocation5 + $0x50] sm:$0xff]
    %v706 = vld [vmem:[#allocation5 + $0x58] sm:$0xff]
    %v707 = vld [vmem:[#allocation5 + $0x60] sm:$0xff]
    %v708 = vld [vmem:[#allocation5 + $0x68] sm:$0xff]
    %v709 = vld [vmem:[#allocation5 + $0x70] sm:$0xff]
    %v710 = vld [vmem:[#allocation5 + $0x78] sm:$0xff]
    %v711 = vld [vmem:[#allocation5 + $0x80] sm:$0xff]
    %v712 = vld [vmem:[#allocation5 + $0x88] sm:$0xff]
    %v713 = vld [vmem:[#allocation5 + $0x90] sm:$0xff]
    %v714 = vld [vmem:[#allocation5 + $0x98] sm:$0xff]
    %v715 = vld [vmem:[#allocation5 + $0xa0] sm:$0xff]
    %v716 = vld [vmem:[#allocation5 + $0xa8] sm:$0xff]
    %v717 = vld [vmem:[#allocation5 + $0xb0] sm:$0xff]
    %v718 = vld [vmem:[#allocation5 + $0xb8] sm:$0xff]
    %v719 = vld [vmem:[#allocation5 + $0xc0] sm:$0xff]
    %v720 = vld [vmem:[#allocation5 + $0xc8] sm:$0xff]
    %v721 = vld [vmem:[#allocation5 + $0xd0] sm:$0xff]
    %v722 = vld [vmem:[#allocation5 + $0xd8] sm:$0xff]
    %v723 = vld [vmem:[#allocation5 + $0xe0] sm:$0xff]
    %v724 = vld [vmem:[#allocation5 + $0xe8] sm:$0xff]
    %v725 = vld [vmem:[#allocation5 + $0xf0] sm:$0xff]
    %v726 = vld [vmem:[#allocation5 + $0xf8] sm:$0xff]
    %v727 = vld [vmem:[#allocation5 + $0x100] sm:$0xff]
    %v728 = vld [vmem:[#allocation5 + $0x108] sm:$0xff]
    %v729 = vld [vmem:[#allocation5 + $0x110] sm:$0xff]
    %v730 = vld [vmem:[#allocation5 + $0x118] sm:$0xff]
    %v731 = vld [vmem:[#allocation5 + $0x120] sm:$0xff]
    %v732 = vld [vmem:[#allocation5 + $0x128] sm:$0xff]
    %v733 = vld [vmem:[#allocation5 + $0x130] sm:$0xff]
    %v734 = vld [vmem:[#allocation5 + $0x138] sm:$0xff]
    %v735 = vld [vmem:[#allocation5 + $0x140] sm:$0xff]
    %v736 = vld [vmem:[#allocation5 + $0x148] sm:$0xff]
    %v737 = vld [vmem:[#allocation5 + $0x150] sm:$0xff]
    %v738 = vld [vmem:[#allocation5 + $0x158] sm:$0xff]
    %v739 = vld [vmem:[#allocation5 + $0x160] sm:$0xff]
    %v740 = vld [vmem:[#allocation5 + $0x168] sm:$0xff]
    %v741 = vld [vmem:[#allocation5 + $0x170] sm:$0xff]
    %v742 = vld [vmem:[#allocation5 + $0x178] sm:$0xff]
    %v743 = vld [vmem:[#allocation5 + $0x180] sm:$0xff]
    %v744 = vld [vmem:[#allocation5 + $0x188] sm:$0xff]
    %v745 = vld [vmem:[#allocation5 + $0x190] sm:$0xff]
    %v746 = vld [vmem:[#allocation5 + $0x198] sm:$0xff]
    %v747 = vld [vmem:[#allocation5 + $0x1a0] sm:$0xff]
    %v748 = vld [vmem:[#allocation5 + $0x1a8] sm:$0xff]
    %v749 = vld [vmem:[#allocation5 + $0x1b0] sm:$0xff]
    %v750 = vld [vmem:[#allocation5 + $0x1b8] sm:$0xff]
    %v751 = vld [vmem:[#allocation5 + $0x1c0] sm:$0xff]
    %v752 = vld [vmem:[#allocation5 + $0x1c8] sm:$0xff]
    %v753 = vld [vmem:[#allocation5 + $0x1d0] sm:$0xff]
    %v754 = vld [vmem:[#allocation5 + $0x1d8] sm:$0xff]
    %v755 = vld [vmem:[#allocation5 + $0x1e0] sm:$0xff]
    %v756 = vld [vmem:[#allocation5 + $0x1e8] sm:$0xff]
    %v757 = vld [vmem:[#allocation5 + $0x1f0] sm:$0xff]
    %v758 = vld [vmem:[#allocation5 + $0x1f8] sm:$0xff]
    %s759 = scalar_lea.vmem %s7, 3
    %v760 = vld [vmem:[%s759] ss:$8 sm:$0x3]
    %v762 = vlaneseq
    %v763 = vshrl.u32 %v762, 7
    %v764 = vsub.s32 0, %v763
    %v765 = vrot.slane %v760, %v764
    %v766 = vlaneseq
    %v767 = vshrl.u32 %v766, 7
    %v768 = vsub.s32 1, %v767
    %v769 = vrot.slane %v760, %v768
    %772 = vmatprep.subr.mxu0 %v696
    %773 = vmatpush1.msra.mxu0 %v695
    %774 = vmatprep.subr.mxu0 %v698
    %775 = vmatpush1.msra.mxu0 %v697
    %776 = vmatprep.subr.mxu0 %v700
    %777 = vmatpush1.msra.mxu0 %v699
    %778 = vmatprep.subr.mxu0 %v702
    %779 = vmatpush1.msra.mxu0 %v701
    %780 = vmatprep.subr.mxu0 %v704
    %781 = vmatpush1.msra.mxu0 %v703
    %782 = vmatprep.subr.mxu0 %v706
    %783 = vmatpush1.msra.mxu0 %v705
    %784 = vmatprep.subr.mxu0 %v708
    %785 = vmatpush1.msra.mxu0 %v707
    %786 = vmatprep.subr.mxu0 %v710
    %787 = vmatpush1.msra.mxu0 %v709
    %788 = vmatprep.subr.mxu0 %v712
    %789 = vmatpush1.msra.mxu0 %v711
    %790 = vmatprep.subr.mxu0 %v714
    %791 = vmatpush1.msra.mxu0 %v713
    %792 = vmatprep.subr.mxu0 %v716
    %793 = vmatpush1.msra.mxu0 %v715
    %794 = vmatprep.subr.mxu0 %v718
    %795 = vmatpush1.msra.mxu0 %v717
    %796 = vmatprep.subr.mxu0 %v720
    %797 = vmatpush1.msra.mxu0 %v719
    %798 = vmatprep.subr.mxu0 %v722
    %799 = vmatpush1.msra.mxu0 %v721
    %800 = vmatprep.subr.mxu0 %v724
    %801 = vmatpush1.msra.mxu0 %v723
    %802 = vmatprep.subr.mxu0 %v726
    %803 = vmatpush1.msra.mxu0 %v725
    %804 = vmatprep.subr.mxu0 %v728
    %805 = vmatpush1.msra.mxu0 %v727
    %806 = vmatprep.subr.mxu0 %v730
    %807 = vmatpush1.msra.mxu0 %v729
    %808 = vmatprep.subr.mxu0 %v732
    %809 = vmatpush1.msra.mxu0 %v731
    %810 = vmatprep.subr.mxu0 %v734
    %811 = vmatpush1.msra.mxu0 %v733
    %812 = vmatprep.subr.mxu0 %v736
    %813 = vmatpush1.msra.mxu0 %v735
    %814 = vmatprep.subr.mxu0 %v738
    %815 = vmatpush1.msra.mxu0 %v737
    %816 = vmatprep.subr.mxu0 %v740
    %817 = vmatpush1.msra.mxu0 %v739
    %818 = vmatprep.subr.mxu0 %v742
    %819 = vmatpush1.msra.mxu0 %v741
    %820 = vmatprep.subr.mxu0 %v744
    %821 = vmatpush1.msra.mxu0 %v743
    %822 = vmatprep.subr.mxu0 %v746
    %823 = vmatpush1.msra.mxu0 %v745
    %824 = vmatprep.subr.mxu0 %v748
    %825 = vmatpush1.msra.mxu0 %v747
    %826 = vmatprep.subr.mxu0 %v750
    %827 = vmatpush1.msra.mxu0 %v749
    %828 = vmatprep.subr.mxu0 %v752
    %829 = vmatpush1.msra.mxu0 %v751
    %830 = vmatprep.subr.mxu0 %v754
    %831 = vmatpush1.msra.mxu0 %v753
    %832 = vmatprep.subr.mxu0 %v756
    %833 = vmatpush1.msra.mxu0 %v755
    %834 = vmatprep.subr.mxu0 %v758
    %835 = vmatpush1.msra.mxu0 %v757
    %836 = vmatprep.mubr.f32.mxu0 %v646
    %837 = vmatmul.mubr.f32.gmra.mrb[0].mxu0 %v645
    %v838 = vpop.f32.mrb[0].mxu0
    %v839 = vadd.f32 %v765, %v838
    %v840 = vpop.f32.mrb[0].mxu0
    %v841 = vadd.f32 %v769, %v840
    %842 = vmatprep.mubr.f32.mxu0 %v694
    %843 = vmatmul.mubr.f32.gmra.mrb[0].mxu0 %v693
    %v844 = vpop.f32.mrb[0].mxu0
    %v845 = vadd.f32 %v765, %v844
    %v846 = vpop.f32.mrb[0].mxu0
    %v847 = vadd.f32 %v769, %v846
    %848 = vdwg.mxu0
    %s849 = scalar_lea.vmem %s7, 4
    %v850 = vld [vmem:[%s849] ss:$8 sm:$0x3]
    %s851 = scalar_lea.vmem %s7, 5
    %v852 = vld [vmem:[%s851] ss:$8 sm:$0x3]
    %v853 = vrot.slane %v839, 4
    %v854 = vadd.f32 %v839, %v853
    %v855 = vrot.slane %v854, 2
    %v856 = vadd.f32 %v854, %v855
    %v857 = vrot.slane %v856, 1
    %v858 = vadd.f32 %v856, %v857
    %v859 = vrot.slane %v841, 4
    %v860 = vadd.f32 %v841, %v859
    %v861 = vrot.slane %v860, 2
    %v862 = vadd.f32 %v860, %v861
    %v863 = vrot.slane %v862, 1
    %v864 = vadd.f32 %v862, %v863
    %v865 = vmul.f32 %v858, 0.125
    %v866 = vmul.f32 %v864, 0.125
    %v867 = vmul.f32 %v839, %v839
    %v868 = vmul.f32 %v841, %v841
    %v869 = vrot.slane %v867, 4
    %v870 = vadd.f32 %v867, %v869
    %v871 = vrot.slane %v870, 2
    %v872 = vadd.f32 %v870, %v871
    %v873 = vrot.slane %v872, 1
    %v874 = vadd.f32 %v872, %v873
    %v875 = vrot.slane %v868, 4
    %v876 = vadd.f32 %v868, %v875
    %v877 = vrot.slane %v876, 2
    %v878 = vadd.f32 %v876, %v877
    %v879 = vrot.slane %v878, 1
    %v880 = vadd.f32 %v878, %v879
    %v881 = vmul.f32 %v874, 0.125
    %v882 = vmul.f32 %v880, 0.125
    %v883 = vmul.f32 %v865, %v865
    %v884 = vmul.f32 %v866, %v866
    %v885 = vsub.f32 %v881, %v883
    %v886 = vsub.f32 %v882, %v884
    %v887 = vsub.f32 %v839, %v865
    %v888 = vsub.f32 %v841, %v866
    %v889 = vadd.f32 %v885, 1e-05
    %v890 = vadd.f32 %v886, 1e-05
    %v891 = vrsqrt.pop %v889
    %v892 = vrsqrt.pop %v890
    %v893 = vmul.f32 %v887, %v891
    %v894 = vmul.f32 %v888, %v892
    %v896 = vlaneseq
    %v897 = vshrl.u32 %v896, 7
    %v898 = vsub.s32 0, %v897
    %v899 = vrot.slane %v850, %v898
    %v900 = vlaneseq
    %v901 = vshrl.u32 %v900, 7
    %v902 = vsub.s32 1, %v901
    %v903 = vrot.slane %v850, %v902
    %v906 = vmul.f32 %v893, %v899
    %v907 = vmul.f32 %v894, %v903
    %v909 = vlaneseq
    %v910 = vshrl.u32 %v909, 7
    %v911 = vsub.s32 0, %v910
    %v912 = vrot.slane %v852, %v911
    %v913 = vlaneseq
    %v914 = vshrl.u32 %v913, 7
    %v915 = vsub.s32 1, %v914
    %v916 = vrot.slane %v852, %v915
    %v919 = vadd.f32 %v906, %v912
    %v920 = vadd.f32 %v907, %v916
    %v921 = vmax.f32 %v919, 0.0
    %v922 = vmax.f32 %v920, 0.0
    %v923 = vrot.slane %v845, 4
    %v924 = vadd.f32 %v845, %v923
    %v925 = vrot.slane %v924, 2
    %v926 = vadd.f32 %v924, %v925
    %v927 = vrot.slane %v926, 1
    %v928 = vadd.f32 %v926, %v927
    %v929 = vrot.slane %v847, 4
    %v930 = vadd.f32 %v847, %v929
    %v931 = vrot.slane %v930, 2
    %v932 = vadd.f32 %v930, %v931
    %v933 = vrot.slane %v932, 1
    %v934 = vadd.f32 %v932, %v933
    %v935 = vmul.f32 %v928, 0.125
    %v936 = vmul.f32 %v934, 0.125
    %v937 = vmul.f32 %v845, %v845
    %v938 = vmul.f32 %v847, %v847
    %v939 = vrot.slane %v937, 4
    %v940 = vadd.f32 %v937, %v939
    %v941 = vrot.slane %v940, 2
    %v942 = vadd.f32 %v940, %v941
    %v943 = vrot.slane %v942, 1
    %v944 = vadd.f32 %v942, %v943
    %v945 = vrot.slane %v938, 4
    %v946 = vadd.f32 %v938, %v945
    %v947 = vrot.slane %v946, 2
    %v948 = vadd.f32 %v946, %v947
    %v949 = vrot.slane %v948, 1
    %v950 = vadd.f32 %v948, %v949
    %v951 = vmul.f32 %v944, 0.125
    %v952 = vmul.f32 %v950, 0.125
    %v953 = vmul.f32 %v935, %v935
    %v954 = vmul.f32 %v936, %v936
    %v955 = vsub.f32 %v951, %v953
    %v956 = vsub.f32 %v952, %v954
    %v957 = vsub.f32 %v845, %v935
    %v958 = vsub.f32 %v847, %v936
    %v959 = vadd.f32 %v955, 1e-05
    %v960 = vadd.f32 %v956, 1e-05
    %v961 = vrsqrt.pop %v959
    %v962 = vrsqrt.pop %v960
    %v963 = vmul.f32 %v957, %v961
    %v964 = vmul.f32 %v958, %v962
    %v965 = vmul.f32 %v963, %v899
    %v966 = vmul.f32 %v964, %v903
    %v967 = vadd.f32 %v965, %v912
    %v968 = vadd.f32 %v966, %v916
    %v969 = vmax.f32 %v967, 0.0
    %v970 = vmax.f32 %v968, 0.0
    %v971 = vld [vmem:[#allocation7] sm:$0xff]
    %v972 = vld [vmem:[#allocation7 + $0x8] sm:$0xff]
    %v973 = vld [vmem:[#allocation7 + $0x10] sm:$0xff]
    %v974 = vld [vmem:[#allocation7 + $0x18] sm:$0xff]
    %v975 = vld [vmem:[#allocation7 + $0x20] sm:$0xff]
    %v976 = vld [vmem:[#allocation7 + $0x28] sm:$0xff]
    %v977 = vld [vmem:[#allocation7 + $0x30] sm:$0xff]
    %v978 = vld [vmem:[#allocation7 + $0x38] sm:$0xff]
    %v979 = vld [vmem:[#allocation7 + $0x40] sm:$0xff]
    %v980 = vld [vmem:[#allocation7 + $0x48] sm:$0xff]
    %v981 = vld [vmem:[#allocation7 + $0x50] sm:$0xff]
    %v982 = vld [vmem:[#allocation7 + $0x58] sm:$0xff]
    %v983 = vld [vmem:[#allocation7 + $0x60] sm:$0xff]
    %v984 = vld [vmem:[#allocation7 + $0x68] sm:$0xff]
    %v985 = vld [vmem:[#allocation7 + $0x70] sm:$0xff]
    %v986 = vld [vmem:[#allocation7 + $0x78] sm:$0xff]
    %v987 = vld [vmem:[#allocation7 + $0x80] sm:$0xff]
    %v988 = vld [vmem:[#allocation7 + $0x88] sm:$0xff]
    %v989 = vld [vmem:[#allocation7 + $0x90] sm:$0xff]
    %v990 = vld [vmem:[#allocation7 + $0x98] sm:$0xff]
    %v991 = vld [vmem:[#allocation7 + $0xa0] sm:$0xff]
    %v992 = vld [vmem:[#allocation7 + $0xa8] sm:$0xff]
    %v993 = vld [vmem:[#allocation7 + $0xb0] sm:$0xff]
    %v994 = vld [vmem:[#allocation7 + $0xb8] sm:$0xff]
    %v995 = vld [vmem:[#allocation7 + $0xc0] sm:$0xff]
    %v996 = vld [vmem:[#allocation7 + $0xc8] sm:$0xff]
    %v997 = vld [vmem:[#allocation7 + $0xd0] sm:$0xff]
    %v998 = vld [vmem:[#allocation7 + $0xd8] sm:$0xff]
    %v999 = vld [vmem:[#allocation7 + $0xe0] sm:$0xff]
    %v1000 = vld [vmem:[#allocation7 + $0xe8] sm:$0xff]
    %v1001 = vld [vmem:[#allocation7 + $0xf0] sm:$0xff]
    %v1002 = vld [vmem:[#allocation7 + $0xf8] sm:$0xff]
    %v1003 = vld [vmem:[#allocation7 + $0x100] sm:$0xff]
    %v1004 = vld [vmem:[#allocation7 + $0x108] sm:$0xff]
    %v1005 = vld [vmem:[#allocation7 + $0x110] sm:$0xff]
    %v1006 = vld [vmem:[#allocation7 + $0x118] sm:$0xff]
    %v1007 = vld [vmem:[#allocation7 + $0x120] sm:$0xff]
    %v1008 = vld [vmem:[#allocation7 + $0x128] sm:$0xff]
    %v1009 = vld [vmem:[#allocation7 + $0x130] sm:$0xff]
    %v1010 = vld [vmem:[#allocation7 + $0x138] sm:$0xff]
    %v1011 = vld [vmem:[#allocation7 + $0x140] sm:$0xff]
    %v1012 = vld [vmem:[#allocation7 + $0x148] sm:$0xff]
    %v1013 = vld [vmem:[#allocation7 + $0x150] sm:$0xff]
    %v1014 = vld [vmem:[#allocation7 + $0x158] sm:$0xff]
    %v1015 = vld [vmem:[#allocation7 + $0x160] sm:$0xff]
    %v1016 = vld [vmem:[#allocation7 + $0x168] sm:$0xff]
    %v1017 = vld [vmem:[#allocation7 + $0x170] sm:$0xff]
    %v1018 = vld [vmem:[#allocation7 + $0x178] sm:$0xff]
    %v1019 = vld [vmem:[#allocation7 + $0x180] sm:$0xff]
    %v1020 = vld [vmem:[#allocation7 + $0x188] sm:$0xff]
    %v1021 = vld [vmem:[#allocation7 + $0x190] sm:$0xff]
    %v1022 = vld [vmem:[#allocation7 + $0x198] sm:$0xff]
    %v1023 = vld [vmem:[#allocation7 + $0x1a0] sm:$0xff]
    %v1024 = vld [vmem:[#allocation7 + $0x1a8] sm:$0xff]
    %v1025 = vld [vmem:[#allocation7 + $0x1b0] sm:$0xff]
    %v1026 = vld [vmem:[#allocation7 + $0x1b8] sm:$0xff]
    %v1027 = vld [vmem:[#allocation7 + $0x1c0] sm:$0xff]
    %v1028 = vld [vmem:[#allocation7 + $0x1c8] sm:$0xff]
    %v1029 = vld [vmem:[#allocation7 + $0x1d0] sm:$0xff]
    %v1030 = vld [vmem:[#allocation7 + $0x1d8] sm:$0xff]
    %v1031 = vld [vmem:[#allocation7 + $0x1e0] sm:$0xff]
    %v1032 = vld [vmem:[#allocation7 + $0x1e8] sm:$0xff]
    %v1033 = vld [vmem:[#allocation7 + $0x1f0] sm:$0xff]
    %v1034 = vld [vmem:[#allocation7 + $0x1f8] sm:$0xff]
    %s1035 = scalar_lea.vmem %s7, 6
    %v1036 = vld [vmem:[%s1035] ss:$8 sm:$0x3]
    %v1038 = vlaneseq
    %v1039 = vshrl.u32 %v1038, 7
    %v1040 = vsub.s32 0, %v1039
    %v1041 = vrot.slane %v1036, %v1040
    %v1042 = vlaneseq
    %v1043 = vshrl.u32 %v1042, 7
    %v1044 = vsub.s32 1, %v1043
    %v1045 = vrot.slane %v1036, %v1044
    %1048 = vmatprep.subr.mxu0 %v972
    %1049 = vmatpush1.msra.mxu0 %v971
    %1050 = vmatprep.subr.mxu0 %v974
    %1051 = vmatpush1.msra.mxu0 %v973
    %1052 = vmatprep.subr.mxu0 %v976
    %1053 = vmatpush1.msra.mxu0 %v975
    %1054 = vmatprep.subr.mxu0 %v978
    %1055 = vmatpush1.msra.mxu0 %v977
    %1056 = vmatprep.subr.mxu0 %v980
    %1057 = vmatpush1.msra.mxu0 %v979
    %1058 = vmatprep.subr.mxu0 %v982
    %1059 = vmatpush1.msra.mxu0 %v981
    %1060 = vmatprep.subr.mxu0 %v984
    %1061 = vmatpush1.msra.mxu0 %v983
    %1062 = vmatprep.subr.mxu0 %v986
    %1063 = vmatpush1.msra.mxu0 %v985
    %1064 = vmatprep.subr.mxu0 %v988
    %1065 = vmatpush1.msra.mxu0 %v987
    %1066 = vmatprep.subr.mxu0 %v990
    %1067 = vmatpush1.msra.mxu0 %v989
    %1068 = vmatprep.subr.mxu0 %v992
    %1069 = vmatpush1.msra.mxu0 %v991
    %1070 = vmatprep.subr.mxu0 %v994
    %1071 = vmatpush1.msra.mxu0 %v993
    %1072 = vmatprep.subr.mxu0 %v996
    %1073 = vmatpush1.msra.mxu0 %v995
    %1074 = vmatprep.subr.mxu0 %v998
    %1075 = vmatpush1.msra.mxu0 %v997
    %1076 = vmatprep.subr.mxu0 %v1000
    %1077 = vmatpush1.msra.mxu0 %v999
    %1078 = vmatprep.subr.mxu0 %v1002
    %1079 = vmatpush1.msra.mxu0 %v1001
    %1080 = vmatprep.subr.mxu0 %v1004
    %1081 = vmatpush1.msra.mxu0 %v1003
    %1082 = vmatprep.subr.mxu0 %v1006
    %1083 = vmatpush1.msra.mxu0 %v1005
    %1084 = vmatprep.subr.mxu0 %v1008
    %1085 = vmatpush1.msra.mxu0 %v1007
    %1086 = vmatprep.subr.mxu0 %v1010
    %1087 = vmatpush1.msra.mxu0 %v1009
    %1088 = vmatprep.subr.mxu0 %v1012
    %1089 = vmatpush1.msra.mxu0 %v1011
    %1090 = vmatprep.subr.mxu0 %v1014
    %1091 = vmatpush1.msra.mxu0 %v1013
    %1092 = vmatprep.subr.mxu0 %v1016
    %1093 = vmatpush1.msra.mxu0 %v1015
    %1094 = vmatprep.subr.mxu0 %v1018
    %1095 = vmatpush1.msra.mxu0 %v1017
    %1096 = vmatprep.subr.mxu0 %v1020
    %1097 = vmatpush1.msra.mxu0 %v1019
    %1098 = vmatprep.subr.mxu0 %v1022
    %1099 = vmatpush1.msra.mxu0 %v1021
    %1100 = vmatprep.subr.mxu0 %v1024
    %1101 = vmatpush1.msra.mxu0 %v1023
    %1102 = vmatprep.subr.mxu0 %v1026
    %1103 = vmatpush1.msra.mxu0 %v1025
    %1104 = vmatprep.subr.mxu0 %v1028
    %1105 = vmatpush1.msra.mxu0 %v1027
    %1106 = vmatprep.subr.mxu0 %v1030
    %1107 = vmatpush1.msra.mxu0 %v1029
    %1108 = vmatprep.subr.mxu0 %v1032
    %1109 = vmatpush1.msra.mxu0 %v1031
    %1110 = vmatprep.subr.mxu0 %v1034
    %1111 = vmatpush1.msra.mxu0 %v1033
    %1112 = vmatprep.mubr.f32.mxu0 %v922
    %1113 = vmatmul.mubr.f32.gmra.mrb[0].mxu0 %v921
    %v1114 = vpop.f32.mrb[0].mxu0
    %v1115 = vadd.f32 %v1041, %v1114
    %v1116 = vpop.f32.mrb[0].mxu0
    %v1117 = vadd.f32 %v1045, %v1116
    %1118 = vmatprep.mubr.f32.mxu0 %v970
    %1119 = vmatmul.mubr.f32.gmra.mrb[0].mxu0 %v969
    %v1120 = vpop.f32.mrb[0].mxu0
    %v1121 = vadd.f32 %v1041, %v1120
    %v1122 = vpop.f32.mrb[0].mxu0
    %v1123 = vadd.f32 %v1045, %v1122
    %1124 = vdwg.mxu0
    %s1125 = scalar_lea.vmem %s7, 7
    %v1126 = vld [vmem:[%s1125] ss:$8 sm:$0x3]
    %s1127 = scalar_lea.vmem %s7, 16
    %v1128 = vld [vmem:[%s1127] ss:$8 sm:$0x3]
    %v1129 = vrot.slane %v1115, 4
    %v1130 = vadd.f32 %v1115, %v1129
    %v1131 = vrot.slane %v1130, 2
    %v1132 = vadd.f32 %v1130, %v1131
    %v1133 = vrot.slane %v1132, 1
    %v1134 = vadd.f32 %v1132, %v1133
    %v1135 = vrot.slane %v1117, 4
    %v1136 = vadd.f32 %v1117, %v1135
    %v1137 = vrot.slane %v1136, 2
    %v1138 = vadd.f32 %v1136, %v1137
    %v1139 = vrot.slane %v1138, 1
    %v1140 = vadd.f32 %v1138, %v1139
    %v1141 = vmul.f32 %v1134, 0.125
    %v1142 = vmul.f32 %v1140, 0.125
    %v1143 = vmul.f32 %v1115, %v1115
    %v1144 = vmul.f32 %v1117, %v1117
    %v1145 = vrot.slane %v1143, 4
    %v1146 = vadd.f32 %v1143, %v1145
    %v1147 = vrot.slane %v1146, 2
    %v1148 = vadd.f32 %v1146, %v1147
    %v1149 = vrot.slane %v1148, 1
    %v1150 = vadd.f32 %v1148, %v1149
    %v1151 = vrot.slane %v1144, 4
    %v1152 = vadd.f32 %v1144, %v1151
    %v1153 = vrot.slane %v1152, 2
    %v1154 = vadd.f32 %v1152, %v1153
    %v1155 = vrot.slane %v1154, 1
    %v1156 = vadd.f32 %v1154, %v1155
    %v1157 = vmul.f32 %v1150, 0.125
    %v1158 = vmul.f32 %v1156, 0.125
    %v1159 = vmul.f32 %v1141, %v1141
    %v1160 = vmul.f32 %v1142, %v1142
    %v1161 = vsub.f32 %v1157, %v1159
    %v1162 = vsub.f32 %v1158, %v1160
    %v1163 = vsub.f32 %v1115, %v1141
    %v1164 = vsub.f32 %v1117, %v1142
    %v1165 = vadd.f32 %v1161, 1e-05
    %v1166 = vadd.f32 %v1162, 1e-05
    %v1167 = vrsqrt.pop %v1165
    %v1168 = vrsqrt.pop %v1166
    %v1169 = vmul.f32 %v1163, %v1167
    %v1170 = vmul.f32 %v1164, %v1168
    %v1172 = vlaneseq
    %v1173 = vshrl.u32 %v1172, 7
    %v1174 = vsub.s32 0, %v1173
    %v1175 = vrot.slane %v1126, %v1174
    %v1176 = vlaneseq
    %v1177 = vshrl.u32 %v1176, 7
    %v1178 = vsub.s32 1, %v1177
    %v1179 = vrot.slane %v1126, %v1178
    %v1182 = vmul.f32 %v1169, %v1175
    %v1183 = vmul.f32 %v1170, %v1179
    %v1185 = vlaneseq
    %v1186 = vshrl.u32 %v1185, 7
    %v1187 = vsub.s32 0, %v1186
    %v1188 = vrot.slane %v1128, %v1187
    %v1189 = vlaneseq
    %v1190 = vshrl.u32 %v1189, 7
    %v1191 = vsub.s32 1, %v1190
    %v1192 = vrot.slane %v1128, %v1191
    %v1195 = vadd.f32 %v1182, %v1188
    %v1196 = vadd.f32 %v1183, %v1192
    %v1197 = vrot.slane %v1121, 4
    %v1198 = vadd.f32 %v1121, %v1197
    %v1199 = vrot.slane %v1198, 2
    %v1200 = vadd.f32 %v1198, %v1199
    %v1201 = vrot.slane %v1200, 1
    %v1202 = vadd.f32 %v1200, %v1201
    %v1203 = vrot.slane %v1123, 4
    %v1204 = vadd.f32 %v1123, %v1203
    %v1205 = vrot.slane %v1204, 2
    %v1206 = vadd.f32 %v1204, %v1205
    %v1207 = vrot.slane %v1206, 1
    %v1208 = vadd.f32 %v1206, %v1207
    %v1209 = vmul.f32 %v1202, 0.125
    %v1210 = vmul.f32 %v1208, 0.125
    %v1211 = vmul.f32 %v1121, %v1121
    %v1212 = vmul.f32 %v1123, %v1123
    %v1213 = vrot.slane %v1211, 4
    %v1214 = vadd.f32 %v1211, %v1213
    %v1215 = vrot.slane %v1214, 2
    %v1216 = vadd.f32 %v1214, %v1215
    %v1217 = vrot.slane %v1216, 1
    %v1218 = vadd.f32 %v1216, %v1217
    %v1219 = vrot.slane %v1212, 4
    %v1220 = vadd.f32 %v1212, %v1219
    %v1221 = vrot.slane %v1220, 2
    %v1222 = vadd.f32 %v1220, %v1221
    %v1223 = vrot.slane %v1222, 1
    %v1224 = vadd.f32 %v1222, %v1223
    %v1225 = vmul.f32 %v1218, 0.125
    %v1226 = vmul.f32 %v1224, 0.125
    %v1227 = vmul.f32 %v1209, %v1209
    %v1228 = vmul.f32 %v1210, %v1210
    %v1229 = vsub.f32 %v1225, %v1227
    %v1230 = vsub.f32 %v1226, %v1228
    %v1231 = vsub.f32 %v1121, %v1209
    %v1232 = vsub.f32 %v1123, %v1210
    %v1233 = vadd.f32 %v1229, 1e-05
    %v1234 = vadd.f32 %v1230, 1e-05
    %v1235 = vrsqrt.pop %v1233
    %v1236 = vrsqrt.pop %v1234
    %v1237 = vmul.f32 %v1231, %v1235
    %v1238 = vmul.f32 %v1232, %v1236
    %v1239 = vmul.f32 %v1237, %v1175
    %v1240 = vmul.f32 %v1238, %v1179
    %v1241 = vadd.f32 %v1239, %v1188
    %v1242 = vadd.f32 %v1240, %v1192
    %v1243 = vld [vmem:[#allocation8] sm:$0xff]
    %v1244 = vld [vmem:[#allocation8 + $0x8] sm:$0xff]
    %v1245 = vld [vmem:[#allocation8 + $0x10] sm:$0xff]
    %v1246 = vld [vmem:[#allocation8 + $0x18] sm:$0xff]
    %v1247 = vld [vmem:[#allocation8 + $0x20] sm:$0xff]
    %v1248 = vld [vmem:[#allocation8 + $0x28] sm:$0xff]
    %v1249 = vld [vmem:[#allocation8 + $0x30] sm:$0xff]
    %v1250 = vld [vmem:[#allocation8 + $0x38] sm:$0xff]
    %v1251 = vld [vmem:[#allocation8 + $0x40] sm:$0xff]
    %v1252 = vld [vmem:[#allocation8 + $0x48] sm:$0xff]
    %v1253 = vld [vmem:[#allocation8 + $0x50] sm:$0xff]
    %v1254 = vld [vmem:[#allocation8 + $0x58] sm:$0xff]
    %v1255 = vld [vmem:[#allocation8 + $0x60] sm:$0xff]
    %v1256 = vld [vmem:[#allocation8 + $0x68] sm:$0xff]
    %v1257 = vld [vmem:[#allocation8 + $0x70] sm:$0xff]
    %v1258 = vld [vmem:[#allocation8 + $0x78] sm:$0xff]
    %v1259 = vld [vmem:[#allocation8 + $0x80] sm:$0xff]
    %v1260 = vld [vmem:[#allocation8 + $0x88] sm:$0xff]
    %v1261 = vld [vmem:[#allocation8 + $0x90] sm:$0xff]
    %v1262 = vld [vmem:[#allocation8 + $0x98] sm:$0xff]
    %v1263 = vld [vmem:[#allocation8 + $0xa0] sm:$0xff]
    %v1264 = vld [vmem:[#allocation8 + $0xa8] sm:$0xff]
    %v1265 = vld [vmem:[#allocation8 + $0xb0] sm:$0xff]
    %v1266 = vld [vmem:[#allocation8 + $0xb8] sm:$0xff]
    %v1267 = vld [vmem:[#allocation8 + $0xc0] sm:$0xff]
    %v1268 = vld [vmem:[#allocation8 + $0xc8] sm:$0xff]
    %v1269 = vld [vmem:[#allocation8 + $0xd0] sm:$0xff]
    %v1270 = vld [vmem:[#allocation8 + $0xd8] sm:$0xff]
    %v1271 = vld [vmem:[#allocation8 + $0xe0] sm:$0xff]
    %v1272 = vld [vmem:[#allocation8 + $0xe8] sm:$0xff]
    %v1273 = vld [vmem:[#allocation8 + $0xf0] sm:$0xff]
    %v1274 = vld [vmem:[#allocation8 + $0xf8] sm:$0xff]
    %v1275 = vld [vmem:[%s7 + $0x11] ss:$0 sm:$0xff]
    %1276 = vmatprep.subr.mxu0 0.0
    %1277 = vmatpush1.msra.mxu0 %v1243
    %1278 = vmatprep.subr.mxu0 0.0
    %1279 = vmatpush1.msra.mxu0 %v1244
    %1280 = vmatprep.subr.mxu0 0.0
    %1281 = vmatpush1.msra.mxu0 %v1245
    %1282 = vmatprep.subr.mxu0 0.0
    %1283 = vmatpush1.msra.mxu0 %v1246
    %1284 = vmatprep.subr.mxu0 0.0
    %1285 = vmatpush1.msra.mxu0 %v1247
    %1286 = vmatprep.subr.mxu0 0.0
    %1287 = vmatpush1.msra.mxu0 %v1248
    %1288 = vmatprep.subr.mxu0 0.0
    %1289 = vmatpush1.msra.mxu0 %v1249
    %1290 = vmatprep.subr.mxu0 0.0
    %1291 = vmatpush1.msra.mxu0 %v1250
    %1292 = vmatprep.subr.mxu0 0.0
    %1293 = vmatpush1.msra.mxu0 %v1251
    %1294 = vmatprep.subr.mxu0 0.0
    %1295 = vmatpush1.msra.mxu0 %v1252
    %1296 = vmatprep.subr.mxu0 0.0
    %1297 = vmatpush1.msra.mxu0 %v1253
    %1298 = vmatprep.subr.mxu0 0.0
    %1299 = vmatpush1.msra.mxu0 %v1254
    %1300 = vmatprep.subr.mxu0 0.0
    %1301 = vmatpush1.msra.mxu0 %v1255
    %1302 = vmatprep.subr.mxu0 0.0
    %1303 = vmatpush1.msra.mxu0 %v1256
    %1304 = vmatprep.subr.mxu0 0.0
    %1305 = vmatpush1.msra.mxu0 %v1257
    %1306 = vmatprep.subr.mxu0 0.0
    %1307 = vmatpush1.msra.mxu0 %v1258
    %1308 = vmatprep.subr.mxu0 0.0
    %1309 = vmatpush1.msra.mxu0 %v1259
    %1310 = vmatprep.subr.mxu0 0.0
    %1311 = vmatpush1.msra.mxu0 %v1260
    %1312 = vmatprep.subr.mxu0 0.0
    %1313 = vmatpush1.msra.mxu0 %v1261
    %1314 = vmatprep.subr.mxu0 0.0
    %1315 = vmatpush1.msra.mxu0 %v1262
    %1316 = vmatprep.subr.mxu0 0.0
    %1317 = vmatpush1.msra.mxu0 %v1263
    %1318 = vmatprep.subr.mxu0 0.0
    %1319 = vmatpush1.msra.mxu0 %v1264
    %1320 = vmatprep.subr.mxu0 0.0
    %1321 = vmatpush1.msra.mxu0 %v1265
    %1322 = vmatprep.subr.mxu0 0.0
    %1323 = vmatpush1.msra.mxu0 %v1266
    %1324 = vmatprep.subr.mxu0 0.0
    %1325 = vmatpush1.msra.mxu0 %v1267
    %1326 = vmatprep.subr.mxu0 0.0
    %1327 = vmatpush1.msra.mxu0 %v1268
    %1328 = vmatprep.subr.mxu0 0.0
    %1329 = vmatpush1.msra.mxu0 %v1269
    %1330 = vmatprep.subr.mxu0 0.0
    %1331 = vmatpush1.msra.mxu0 %v1270
    %1332 = vmatprep.subr.mxu0 0.0
    %1333 = vmatpush1.msra.mxu0 %v1271
    %1334 = vmatprep.subr.mxu0 0.0
    %1335 = vmatpush1.msra.mxu0 %v1272
    %1336 = vmatprep.subr.mxu0 0.0
    %1337 = vmatpush1.msra.mxu0 %v1273
    %1338 = vmatprep.subr.mxu0 0.0
    %1339 = vmatpush1.msra.mxu0 %v1274
    %1340 = vmatprep.mubr.f32.mxu0 %v1196
    %1341 = vmatmul.mubr.f32.gmra.mrb[0].mxu0 %v1195
    %v1342 = vpop.f32.mrb[0].mxu0
    %v1343 = vadd.f32 %v1275, %v1342
    %v1344 = vpop.f32.mrb[0].mxu0
    %1345 = vmatprep.mubr.f32.mxu0 %v1242
    %1346 = vmatmul.mubr.f32.gmra.mrb[0].mxu0 %v1241
    %v1347 = vpop.f32.mrb[0].mxu0
    %v1348 = vadd.f32 %v1275, %v1347
    %v1349 = vpop.f32.mrb[0].mxu0
    %1350 = vdwg.mxu0
    %v1351 = vld [vmem:[%s7 + $0x12] ss:$0 sm:$0xff]
    %v1352 = vld [vmem:[%s7 + $0x13] ss:$0 sm:$0xff]
    %v1353 = vrot.slane %v1343, 4
    %v1354 = vadd.f32 %v1343, %v1353
    %v1355 = vrot.slane %v1354, 2
    %v1356 = vadd.f32 %v1354, %v1355
    %v1357 = vrot.slane %v1356, 1
    %v1358 = vadd.f32 %v1356, %v1357
    %v1359 = vmul.f32 %v1358, 0.125
    %v1360 = vmul.f32 %v1343, %v1343
    %v1361 = vrot.slane %v1360, 4
    %v1362 = vadd.f32 %v1360, %v1361
    %v1363 = vrot.slane %v1362, 2
    %v1364 = vadd.f32 %v1362, %v1363
    %v1365 = vrot.slane %v1364, 1
    %v1366 = vadd.f32 %v1364, %v1365
    %v1367 = vmul.f32 %v1366, 0.125
    %v1368 = vmul.f32 %v1359, %v1359
    %v1369 = vsub.f32 %v1367, %v1368
    %v1370 = vsub.f32 %v1343, %v1359
    %v1371 = vadd.f32 %v1369, 1e-05
    %v1372 = vrsqrt.pop %v1371
    %v1373 = vmul.f32 %v1370, %v1372
    %v1374 = vmul.f32 %v1373, %v1351
    %v1375 = vadd.f32 %v1374, %v1352
    %v1376 = vmax.f32 %v1375, 0.0
    %v1377 = vrot.slane %v1348, 4
    %v1378 = vadd.f32 %v1348, %v1377
    %v1379 = vrot.slane %v1378, 2
    %v1380 = vadd.f32 %v1378, %v1379
    %v1381 = vrot.slane %v1380, 1
    %v1382 = vadd.f32 %v1380, %v1381
    %v1383 = vmul.f32 %v1382, 0.125
    %v1384 = vmul.f32 %v1348, %v1348
    %v1385 = vrot.slane %v1384, 4
    %v1386 = vadd.f32 %v1384, %v1385
    %v1387 = vrot.slane %v1386, 2
    %v1388 = vadd.f32 %v1386, %v1387
    %v1389 = vrot.slane %v1388, 1
    %v1390 = vadd.f32 %v1388, %v1389
    %v1391 = vmul.f32 %v1390, 0.125
    %v1392 = vmul.f32 %v1383, %v1383
    %v1393 = vsub.f32 %v1391, %v1392
    %v1394 = vsub.f32 %v1348, %v1383
    %v1395 = vadd.f32 %v1393, 1e-05
    %v1396 = vrsqrt.pop %v1395
    %v1397 = vmul.f32 %v1394, %v1396
    %v1398 = vmul.f32 %v1397, %v1351
    %v1399 = vadd.f32 %v1398, %v1352
    %v1400 = vmax.f32 %v1399, 0.0
    %v1401 = vld [vmem:[#allocation10] sm:$0xff]
    %v1402 = vld [vmem:[#allocation10 + $0x8] sm:$0xff]
    %v1403 = vld [vmem:[#allocation10 + $0x10] sm:$0xff]
    %v1404 = vld [vmem:[#allocation10 + $0x18] sm:$0xff]
    %v1405 = vld [vmem:[#allocation10 + $0x20] sm:$0xff]
    %v1406 = vld [vmem:[#allocation10 + $0x28] sm:$0xff]
    %v1407 = vld [vmem:[#allocation10 + $0x30] sm:$0xff]
    %v1408 = vld [vmem:[#allocation10 + $0x38] sm:$0xff]
    %v1409 = vld [vmem:[#allocation10 + $0x40] sm:$0xff]
    %v1410 = vld [vmem:[#allocation10 + $0x48] sm:$0xff]
    %v1411 = vld [vmem:[#allocation10 + $0x50] sm:$0xff]
    %v1412 = vld [vmem:[#allocation10 + $0x58] sm:$0xff]
    %v1413 = vld [vmem:[#allocation10 + $0x60] sm:$0xff]
    %v1414 = vld [vmem:[#allocation10 + $0x68] sm:$0xff]
    %v1415 = vld [vmem:[#allocation10 + $0x70] sm:$0xff]
    %v1416 = vld [vmem:[#allocation10 + $0x78] sm:$0xff]
    %v1417 = vld [vmem:[#allocation10 + $0x80] sm:$0xff]
    %v1418 = vld [vmem:[#allocation10 + $0x88] sm:$0xff]
    %v1419 = vld [vmem:[#allocation10 + $0x90] sm:$0xff]
    %v1420 = vld [vmem:[#allocation10 + $0x98] sm:$0xff]
    %v1421 = vld [vmem:[#allocation10 + $0xa0] sm:$0xff]
    %v1422 = vld [vmem:[#allocation10 + $0xa8] sm:$0xff]
    %v1423 = vld [vmem:[#allocation10 + $0xb0] sm:$0xff]
    %v1424 = vld [vmem:[#allocation10 + $0xb8] sm:$0xff]
    %v1425 = vld [vmem:[#allocation10 + $0xc0] sm:$0xff]
    %v1426 = vld [vmem:[#allocation10 + $0xc8] sm:$0xff]
    %v1427 = vld [vmem:[#allocation10 + $0xd0] sm:$0xff]
    %v1428 = vld [vmem:[#allocation10 + $0xd8] sm:$0xff]
    %v1429 = vld [vmem:[#allocation10 + $0xe0] sm:$0xff]
    %v1430 = vld [vmem:[#allocation10 + $0xe8] sm:$0xff]
    %v1431 = vld [vmem:[#allocation10 + $0xf0] sm:$0xff]
    %v1432 = vld [vmem:[#allocation10 + $0xf8] sm:$0xff]
    %s1433 = scalar_lea.vmem %s7, 20
    %v1434 = vld [vmem:[%s1433] ss:$8 sm:$0x3]
    %v1436 = vlaneseq
    %v1437 = vshrl.u32 %v1436, 7
    %v1438 = vsub.s32 0, %v1437
    %v1439 = vrot.slane %v1434, %v1438
    %v1440 = vlaneseq
    %v1441 = vshrl.u32 %v1440, 7
    %v1442 = vsub.s32 1, %v1441
    %v1443 = vrot.slane %v1434, %v1442
    %1446 = vmatprep.subr.mxu0 %v1402
    %1447 = vmatpush1.msra.mxu0 %v1401
    %1448 = vmatprep.subr.mxu0 %v1404
    %1449 = vmatpush1.msra.mxu0 %v1403
    %1450 = vmatprep.subr.mxu0 %v1406
    %1451 = vmatpush1.msra.mxu0 %v1405
    %1452 = vmatprep.subr.mxu0 %v1408
    %1453 = vmatpush1.msra.mxu0 %v1407
    %1454 = vmatprep.subr.mxu0 %v1410
    %1455 = vmatpush1.msra.mxu0 %v1409
    %1456 = vmatprep.subr.mxu0 %v1412
    %1457 = vmatpush1.msra.mxu0 %v1411
    %1458 = vmatprep.subr.mxu0 %v1414
    %1459 = vmatpush1.msra.mxu0 %v1413
    %1460 = vmatprep.subr.mxu0 %v1416
    %1461 = vmatpush1.msra.mxu0 %v1415
    %1462 = vmatprep.subr.mxu0 %v1418
    %1463 = vmatpush1.msra.mxu0 %v1417
    %1464 = vmatprep.subr.mxu0 %v1420
    %1465 = vmatpush1.msra.mxu0 %v1419
    %1466 = vmatprep.subr.mxu0 %v1422
    %1467 = vmatpush1.msra.mxu0 %v1421
    %1468 = vmatprep.subr.mxu0 %v1424
    %1469 = vmatpush1.msra.mxu0 %v1423
    %1470 = vmatprep.subr.mxu0 %v1426
    %1471 = vmatpush1.msra.mxu0 %v1425
    %1472 = vmatprep.subr.mxu0 %v1428
    %1473 = vmatpush1.msra.mxu0 %v1427
    %1474 = vmatprep.subr.mxu0 %v1430
    %1475 = vmatpush1.msra.mxu0 %v1429
    %1476 = vmatprep.subr.mxu0 %v1432
    %1477 = vmatpush1.msra.mxu0 %v1431
    %1478 = vmatprep.subr.mxu0 0.0
    %1479 = vmatpush1.msra.mxu0 0.0
    %1480 = vmatprep.subr.mxu0 0.0
    %1481 = vmatpush1.msra.mxu0 0.0
    %1482 = vmatprep.subr.mxu0 0.0
    %1483 = vmatpush1.msra.mxu0 0.0
    %1484 = vmatprep.subr.mxu0 0.0
    %1485 = vmatpush1.msra.mxu0 0.0
    %1486 = vmatprep.subr.mxu0 0.0
    %1487 = vmatpush1.msra.mxu0 0.0
    %1488 = vmatprep.subr.mxu0 0.0
    %1489 = vmatpush1.msra.mxu0 0.0
    %1490 = vmatprep.subr.mxu0 0.0
    %1491 = vmatpush1.msra.mxu0 0.0
    %1492 = vmatprep.subr.mxu0 0.0
    %1493 = vmatpush1.msra.mxu0 0.0
    %1494 = vmatprep.subr.mxu0 0.0
    %1495 = vmatpush1.msra.mxu0 0.0
    %1496 = vmatprep.subr.mxu0 0.0
    %1497 = vmatpush1.msra.mxu0 0.0
    %1498 = vmatprep.subr.mxu0 0.0
    %1499 = vmatpush1.msra.mxu0 0.0
    %1500 = vmatprep.subr.mxu0 0.0
    %1501 = vmatpush1.msra.mxu0 0.0
    %1502 = vmatprep.subr.mxu0 0.0
    %1503 = vmatpush1.msra.mxu0 0.0
    %1504 = vmatprep.subr.mxu0 0.0
    %1505 = vmatpush1.msra.mxu0 0.0
    %1506 = vmatprep.subr.mxu0 0.0
    %1507 = vmatpush1.msra.mxu0 0.0
    %1508 = vmatprep.subr.mxu0 0.0
    %1509 = vmatpush1.msra.mxu0 0.0
    %1510 = vmatprep.mubr.f32.mxu0 0.0
    %1511 = vmatmul.mubr.f32.gmra.mrb[0].mxu0 %v1376
    %v1512 = vpop.f32.mrb[0].mxu0
    %v1513 = vadd.f32 %v1439, %v1512
    %v1514 = vpop.f32.mrb[0].mxu0
    %v1515 = vadd.f32 %v1443, %v1514
    %1516 = vmatprep.mubr.f32.mxu0 0.0
    %1517 = vmatmul.mubr.f32.gmra.mrb[0].mxu0 %v1400
    %v1518 = vpop.f32.mrb[0].mxu0
    %v1519 = vadd.f32 %v1439, %v1518
    %v1520 = vpop.f32.mrb[0].mxu0
    %v1521 = vadd.f32 %v1443, %v1520
    %1522 = vdwg.mxu0
    %v1523 = vmul.f32 %v1513, %v1513
    %v1524 = vmul.f32 %v1515, %v1515
    %v1525 = vmul.f32 %v1519, %v1519
    %v1526 = vmul.f32 %v1521, %v1521
    %v1527 = vadd.f32 %v1523, %v1524
    %1528 = vadd.xlane.f32.xlu0 %v1527
    %v1529 = vpop.xlane.xlu0 %1528
    %v1530 = vadd.f32 %v1525, %v1526
    %1531 = vadd.xlane.f32.xlu0 %v1530
    %v1532 = vpop.xlane.xlu0 %1531
    %v1533 = vmax.f32 %v1529, 1e-24
    %v1534 = vmax.f32 %v1532, 1e-24
    %v1535 = vrsqrt.pop %v1533
    %v1536 = vrsqrt.pop %v1534
    %v1537 = vmul.f32 %v1195, %v1195
    %v1538 = vmul.f32 %v1196, %v1196
    %v1539 = vmul.f32 %v1241, %v1241
    %v1540 = vmul.f32 %v1242, %v1242
    %v1541 = vadd.f32 %v1537, %v1538
    %1542 = vadd.xlane.f32.xlu0 %v1541
    %v1543 = vpop.xlane.xlu0 %1542
    %v1544 = vadd.f32 %v1539, %v1540
    %1545 = vadd.xlane.f32.xlu0 %v1544
    %v1546 = vpop.xlane.xlu0 %1545
    %v1547 = vmax.f32 %v1543, 1e-24
    %v1548 = vmax.f32 %v1546, 1e-24
    %v1549 = vrsqrt.pop %v1547
    %v1550 = vrsqrt.pop %v1548
    %v1551 = vmul.f32 %v1513, %v1241
    %v1552 = vmul.f32 %v1515, %v1242
    %v1553 = vadd.f32 %v1551, %v1552
    %1554 = vadd.xlane.f32.xlu0 %v1553
    %v1555 = vpop.xlane.xlu0 %1554
    %v1556 = vmul.f32 %v1555, %v1535
    %v1557 = vmul.f32 %v1556, %v1550
    %v1558 = vmul.f32 %v1519, %v1195
    %v1559 = vmul.f32 %v1521, %v1196
    %v1560 = vadd.f32 %v1558, %v1559
    %1561 = vadd.xlane.f32.xlu0 %v1560
    %v1562 = vpop.xlane.xlu0 %1561
    %v1563 = vmul.f32 %v1562, %v1536
    %v1564 = vmul.f32 %v1563, %v1549
    %v1565 = vrot.slane %v1557, 4
    %v1566 = vadd.f32 %v1557, %v1565
    %v1567 = vrot.slane %v1566, 2
    %v1568 = vadd.f32 %v1566, %v1567
    %v1569 = vrot.slane %v1568, 1
    %v1570 = vadd.f32 %v1568, %v1569
    %v1571 = vrcp.pop 8.0
    %v1572 = vmul.f32 %v1570, %v1571
    %v1573 = vrot.slane %v1564, 4
    %v1574 = vadd.f32 %v1564, %v1573
    %v1575 = vrot.slane %v1574, 2
    %v1576 = vadd.f32 %v1574, %v1575
    %v1577 = vrot.slane %v1576, 1
    %v1578 = vadd.f32 %v1576, %v1577
    %v1579 = vmul.f32 %v1578, %v1571
    %v1580 = vadd.f32 %v1572, %v1579
    %v1581 = vmul.f32 %v1580, -0.5
    %vm1582 = vcmask 0
    %1583 = vst.msk [vmem:[#allocation11] sm:$0x1] %vm1582, %v1581
    // Predicated region
    $region54: #{simsiam_forward.1} parent=1 // pred_check
      _
    $region55: #{simsiam_forward.1} parent=1 // pred_check_branch
      %1585 = sbr.rel (0) target = $region57
    $region56: #{simsiam_forward.1} parent=1 // pred_region
      %s1587 = ssub.s32 16, 16
      %1588 = vsyncadd [#allocation4], %s1587
      %s1590 = sshll.u32 [#allocation11], 4
      %s1591 = int_to_ptr.vmem [resolvable:$true] %s1590
      %1593 = dma.vmem_to_hbm [thread:$0]  %s1591, 16, %s8, [#allocation4]
    $region57: #{simsiam_forward.1} parent=1 // pred_fallthru
      _
    // Predicated region
    $region58: #{simsiam_forward.1} parent=1 // pred_check
      _
    $region59: #{simsiam_forward.1} parent=1 // pred_check_branch
      %1595 = sbr.rel (0) target = $region61
    $region60: #{simsiam_forward.1} parent=1 // pred_region
      %1596 = dma.done [#allocation4], 16
    $region61: #{simsiam_forward.1} parent=1 // pred_fallthru
      _
    %1597 = vsyncpa [#allocation3], 1
    %1598 = vsyncpa [#allocation6], 1
    %1599 = vsyncpa [#allocation9], 1
    %1600 = vsyncpa [#allocation4], 1

</llo_original>
